<compile_context>
chip_gen: v6e
topology: v6e:2x2x1
jax: 0.10.0
libtpu: 0.0.40
codegen_flags: <defaults>
</compile_context>

<pallas_src>
import jax
import jax.numpy as jnp
from jax import lax
from jax.experimental import pallas as pl
from jax.experimental.pallas import tpu as pltpu

NUM_FILTERS = 8
NUM_LAYERS = 4
KSIZE = 2
STRIDE = 2
_TAPS = KSIZE * KSIZE                 # 4 taps per 2x2 window
_TOTAL_STRIDE = STRIDE ** NUM_LAYERS  # 16: spatial reduction of the full stack
_MAX_ROWS_PER_BLOCK = 4096            # cap on layer-1 rows per grid step (VMEM sizing)


# ------------------------------ Pallas kernel ------------------------------ #

def _encoder_fused_kernel(x1_ref, w1_ref, w234_ref, b_ref, pool_ref, o_ref,
                          act_ref):
    """Fused 4x(conv 2x2 stride 2 + ReLU) + global mean pool for one batch block.

    x1_ref   (n1, 4)     layer-1 im2col patches; rows in tap-major hierarchical
                         order, columns in (kh, kw) order.
    w1_ref   (4, 8)      layer-1 weight: rows (kh, kw), cols = out channels.
    w234_ref (3, 32, 8)  layers 2..4 weights; rows of each slab ordered
                         (kh, kw, cin), i.e. rows [p*8:(p+1)*8] == W[:, :, dh, dw].T
    b_ref    (4, 8)      biases, row l = bias of conv layer l+1.
    pool_ref (Bt, Bt*S)  per-batch-element averaging matrix (1/S entries).
    o_ref    (Bt, 8)     encoder features for this batch block.
    act_ref  (n1, 8)     VMEM scratch holding the current activation rows.
    """
    # ---- layer 1: patches @ W1 + b1, ReLU ----
    act = jnp.dot(x1_ref[...], w1_ref[...], preferred_element_type=jnp.float32)
    act = jnp.maximum(act + b_ref[pl.ds(0, 1), :], 0.0)          # (n1, 8)
    act_ref[...] = act
    n = act.shape[0]

    # ---- layers 2..4: sum of 4 tap matmuls over contiguous row-quarters ----
    for l in range(NUM_LAYERS - 1):
        n_out = n // _TAPS
        w_l = w234_ref[l]                                        # (32, 8)
        acc = jnp.zeros((n_out, NUM_FILTERS), jnp.float32)
        for p in range(_TAPS):
            tap = act_ref[pl.ds(p * n_out, n_out), :]            # (n_out, 8)
            acc = acc + jnp.dot(
                tap, w_l[p * NUM_FILTERS:(p + 1) * NUM_FILTERS, :],
                preferred_element_type=jnp.float32)
        act = jnp.maximum(acc + b_ref[pl.ds(l + 1, 1), :], 0.0)
        n = n_out
        if l < NUM_LAYERS - 2:      # next layer reads its taps from the scratch
            act_ref[pl.ds(0, n), :] = act

    # ---- fused adaptive_avg_pool2d((1,1)): per-batch mean as a tiny matmul ----
    o_ref[...] = jnp.dot(pool_ref[...], act,
                         preferred_element_type=jnp.float32).astype(o_ref.dtype)


# ------------------------------- JAX wrapper -------------------------------- #

def _pick_batch_tile(batch, rows_per_batch, max_rows=_MAX_ROWS_PER_BLOCK):
    """Largest batch tile whose layer-1 rows fit the per-grid-step budget."""
    if batch * rows_per_batch <= max_rows:
        return batch
    for bt in range(batch, 0, -1):
        # tiled (Bt, 8) output blocks need Bt % 8 == 0 unless Bt == batch
        if batch % bt == 0 and bt % 8 == 0 and bt * rows_per_batch <= max_rows:
            return bt
    return batch


def _prepare_kernel_params(params):
    """PyTorch-layout conv params -> kernel matmul layouts."""
    w1, _ = params[0]
    w1mat = w1.reshape(NUM_FILTERS, _TAPS).T                       # (4, 8)
    w234 = jnp.stack([
        w.transpose(2, 3, 1, 0).reshape(_TAPS * NUM_FILTERS, NUM_FILTERS)
        for (w, _) in params[1:]])                                 # (3, 32, 8)
    biases = jnp.stack([b for (_, b) in params])                   # (4, 8)
    return w1mat, w234, biases


@jax.jit
def encoder_forward(obs, params):
    """obs: (B, H, W) float32, H and W divisible by 16. Returns (B, NUM_FILTERS)."""
    B, H, W = obs.shape
    assert H % _TOTAL_STRIDE == 0 and W % _TOTAL_STRIDE == 0, (
        "Encoder kernel requires H and W divisible by 16")
    Hb, Wb = H // _TOTAL_STRIDE, W // _TOTAL_STRIDE
    S = Hb * Wb                          # final spatial positions pooled per sample
    rows_pb = (H // 2) * (W // 2)        # layer-1 patch rows per sample

    Bt = _pick_batch_tile(B, rows_pb)
    G = B // Bt
    blk_rows = Bt * rows_pb

    # One-time hierarchical ("tap-major") reorder of the input.  With
    # h = hb*16 + h3*8 + h2*4 + h1*2 + h0 (same for w), rows are ordered
    # (G, h1, w1, h2, w2, h3, w3, Bt, Hb, Wb) and the columns are (h0, w0):
    # every layer's 2x2 window tap then selects a contiguous quarter of the rows.
    x = obs.reshape(G, Bt, Hb, 2, 2, 2, 2, Wb, 2, 2, 2, 2)
    #   axes:       0  1   2   3  4  5  6   7   8  9 10 11
    #               G  Bt  Hb h3 h2 h1 h0  Wb  w3 w2 w1 w0
    x = x.transpose(0, 5, 10, 4, 9, 3, 8, 1, 2, 7, 6, 11)
    x1 = x.reshape(B * rows_pb, _TAPS)

    # Per-block pooling matrix: out[b] = mean over its S final positions.
    pool = (jnp.arange(Bt * S)[None, :] // S
            == jnp.arange(Bt)[:, None]).astype(jnp.float32) / float(S)

    w1mat, w234, biases = _prepare_kernel_params(params)

    # Advisory cost estimate for XLA's scheduler (kernel is latency-bound).
    flops = 2 * (B * rows_pb) * _TAPS * NUM_FILTERS
    m = B * rows_pb
    for _ in range(NUM_LAYERS - 1):
        m //= _TAPS
        flops += 2 * m * _TAPS * NUM_FILTERS * NUM_FILTERS
    flops += 2 * G * Bt * (Bt * S) * NUM_FILTERS
    bytes_accessed = 4 * (x1.size + w1mat.size + w234.size + biases.size
                          + pool.size + B * NUM_FILTERS)

    return pl.pallas_call(
        _encoder_fused_kernel,
        out_shape=jax.ShapeDtypeStruct((B, NUM_FILTERS), jnp.float32),
        grid_spec=pltpu.PrefetchScalarGridSpec(
            num_scalar_prefetch=0,
            grid=(G,),
            in_specs=[
                pl.BlockSpec((blk_rows, _TAPS), lambda g: (g, 0)),
                pl.BlockSpec((_TAPS, NUM_FILTERS), lambda g: (0, 0)),
                pl.BlockSpec((NUM_LAYERS - 1, _TAPS * NUM_FILTERS, NUM_FILTERS),
                             lambda g: (0, 0, 0)),
                pl.BlockSpec((NUM_LAYERS, NUM_FILTERS), lambda g: (0, 0)),
                pl.BlockSpec((Bt, Bt * S), lambda g: (0, 0)),
            ],
            out_specs=pl.BlockSpec((Bt, NUM_FILTERS), lambda g: (g, 0)),
            scratch_shapes=[pltpu.VMEM((blk_rows, NUM_FILTERS), jnp.float32)],
        ),
        compiler_params=pltpu.CompilerParams(
            dimension_semantics=("parallel",)),
        cost_estimate=pl.CostEstimate(flops=flops, transcendentals=0,
                                      bytes_accessed=bytes_accessed),
    )(x1, w1mat, w234, biases, pool)


# ------------------------- init + pure-JAX reference ------------------------ #

def init_encoder_params(key, feature_dim=8):
    """PyTorch-Conv2d-style uniform(-1/sqrt(fan_in), 1/sqrt(fan_in)) init."""
    del feature_dim  # unused by Encoder.forward
    params = []
    cin = 1
    for _ in range(NUM_LAYERS):
        key, kw, kb = jax.random.split(key, 3)
        fan_in = cin * KSIZE * KSIZE
        bound = 1.0 / jnp.sqrt(fan_in)
        w = jax.random.uniform(kw, (NUM_FILTERS, cin, KSIZE, KSIZE),
                               jnp.float32, -bound, bound)
        b = jax.random.uniform(kb, (NUM_FILTERS,), jnp.float32, -bound, bound)
        params.append((w, b))
        cin = NUM_FILTERS
    return params


def encoder_forward_reference(obs, params):
    """Pure-JAX reference (lax.conv) mirroring the PyTorch forward, for checking."""
    x = obs[:, None, :, :]
    for (w, b) in params:
        x = lax.conv_general_dilated(
            x, w, window_strides=(STRIDE, STRIDE), padding="VALID",
            dimension_numbers=("NCHW", "OIHW", "NCHW"))
        x = jax.nn.relu(x + b[None, :, None, None])
    return jnp.mean(x, axis=(2, 3))


# ----------------------------------- main ----------------------------------- #

if __name__ == "__main__":
    key = jax.random.PRNGKey(0)
    key, k_obs, k_par = jax.random.split(key, 3)

    B, H, W = 2, 16, 16                 # 16 -> 8 -> 4 -> 2 -> 1 spatially
    obs = jax.random.normal(k_obs, (B, H, W), jnp.float32)
    params = init_encoder_params(k_par)

    out = jax.block_until_ready(encoder_forward(obs, params))
    ref = jax.block_until_ready(encoder_forward_reference(obs, params))

    assert out.shape == (B, NUM_FILTERS), out.shape
    assert jnp.allclose(out, ref, atol=1e-5, rtol=1e-5), (out, ref)
    print("KERNEL_OK")
</pallas_src>

<mosaic_0001>
module attributes {stable_mosaic.version = 11 : i64} {
  func.func @_encoder_fused_kernel(%arg0: i32, %arg1: memref<128x4xf32, #tpu.memory_space<vmem>>, %arg2: memref<4x8xf32, #tpu.memory_space<vmem>>, %arg3: memref<3x32x8xf32, #tpu.memory_space<vmem>>, %arg4: memref<4x8xf32, #tpu.memory_space<vmem>>, %arg5: memref<2x2xf32, #tpu.memory_space<vmem>>, %arg6: memref<2x8xf32, #tpu.memory_space<vmem>>, %arg7: memref<128x8xf32, #tpu.memory_space<vmem>>) attributes {dimension_semantics = [#tpu.dimension_semantics<parallel>], iteration_bounds = array<i64: 1>, scalar_prefetch = 0 : i64, scratch_operands = 1 : i64, tpu.core_type = #tpu.core_type<tc>, window_params = [{transform_indices = @transform_0, window_bounds = array<i64: 128, 4>}, {pipeline_mode = #tpu.pipeline_mode<synchronous>, transform_indices = @transform_1, window_bounds = array<i64: 4, 8>}, {pipeline_mode = #tpu.pipeline_mode<synchronous>, transform_indices = @transform_2, window_bounds = array<i64: 3, 32, 8>}, {pipeline_mode = #tpu.pipeline_mode<synchronous>, transform_indices = @transform_3, window_bounds = array<i64: 4, 8>}, {pipeline_mode = #tpu.pipeline_mode<synchronous>, transform_indices = @transform_4, window_bounds = array<i64: 2, 2>}, {transform_indices = @transform_5, window_bounds = array<i64: 2, 8>}]} {
    %c0 = arith.constant 0 : index
    %c0_0 = arith.constant 0 : index
    %0 = vector.load %arg1[%c0, %c0_0] : memref<128x4xf32, #tpu.memory_space<vmem>>, vector<128x4xf32>
    %c0_1 = arith.constant 0 : index
    %c0_2 = arith.constant 0 : index
    %1 = vector.load %arg2[%c0_1, %c0_2] : memref<4x8xf32, #tpu.memory_space<vmem>>, vector<4x8xf32>
    %cst = arith.constant dense<0.000000e+00> : vector<128x8xf32>
    %2 = tpu.matmul %0, %1, %cst {dimension_numbers = #tpu.dot_dimension_numbers<[1], [0], [0], [1], [0, 0, 1, 1], [], []>} : vector<128x4xf32>, vector<4x8xf32>, vector<128x8xf32> -> vector<128x8xf32>
    %c0_3 = arith.constant 0 : index
    %c0_4 = arith.constant 0 : index
    %3 = vector.load %arg4[%c0_3, %c0_4] : memref<4x8xf32, #tpu.memory_space<vmem>>, vector<1x8xf32>
    %4 = vector.broadcast %3 : vector<1x8xf32> to vector<128x8xf32>
    %5 = arith.addf %2, %4 : vector<128x8xf32>
    %cst_5 = arith.constant 0.000000e+00 : f32
    %6 = vector.broadcast %cst_5 : f32 to vector<128x8xf32>
    %7 = arith.maximumf %5, %6 : vector<128x8xf32>
    %c0_6 = arith.constant 0 : index
    %c0_7 = arith.constant 0 : index
    %8 = vector.load %arg7[%c0_6, %c0_7] : memref<128x8xf32, #tpu.memory_space<vmem>>, vector<128x8xf32>
    tpu.vector_store %arg7[%c0_6, %c0_7], %7 {strides = array<i32>} : memref<128x8xf32, #tpu.memory_space<vmem>>, vector<128x8xf32>,
    %c0_8 = arith.constant 0 : index
    %c0_9 = arith.constant 0 : index
    %c0_10 = arith.constant 0 : index
    %9 = vector.load %arg3[%c0_8, %c0_9, %c0_10] : memref<3x32x8xf32, #tpu.memory_space<vmem>>, vector<1x32x8xf32>
    %10 = vector.shape_cast %9 : vector<1x32x8xf32> to vector<32x8xf32>
    %cst_11 = arith.constant 0.000000e+00 : f32
    %11 = vector.broadcast %cst_11 : f32 to vector<32x8xf32>
    %c0_12 = arith.constant 0 : index
    %c0_13 = arith.constant 0 : index
    %12 = vector.load %arg7[%c0_12, %c0_13] : memref<128x8xf32, #tpu.memory_space<vmem>>, vector<32x8xf32>
    %13 = vector.extract_strided_slice %10 {offsets = [0, 0], sizes = [8, 8], strides = [1, 1]} : vector<32x8xf32> to vector<8x8xf32>
    %cst_14 = arith.constant dense<0.000000e+00> : vector<32x8xf32>
    %14 = tpu.matmul %12, %13, %cst_14 {dimension_numbers = #tpu.dot_dimension_numbers<[1], [0], [0], [1], [0, 0, 1, 1], [], []>} : vector<32x8xf32>, vector<8x8xf32>, vector<32x8xf32> -> vector<32x8xf32>
    %15 = arith.addf %11, %14 : vector<32x8xf32>
    %c32 = arith.constant 32 : index
    %c0_15 = arith.constant 0 : index
    %16 = vector.load %arg7[%c32, %c0_15] : memref<128x8xf32, #tpu.memory_space<vmem>>, vector<32x8xf32>
    %17 = vector.extract_strided_slice %10 {offsets = [8, 0], sizes = [8, 8], strides = [1, 1]} : vector<32x8xf32> to vector<8x8xf32>
    %cst_16 = arith.constant dense<0.000000e+00> : vector<32x8xf32>
    %18 = tpu.matmul %16, %17, %cst_16 {dimension_numbers = #tpu.dot_dimension_numbers<[1], [0], [0], [1], [0, 0, 1, 1], [], []>} : vector<32x8xf32>, vector<8x8xf32>, vector<32x8xf32> -> vector<32x8xf32>
    %19 = arith.addf %15, %18 : vector<32x8xf32>
    %c64 = arith.constant 64 : index
    %c0_17 = arith.constant 0 : index
    %20 = vector.load %arg7[%c64, %c0_17] : memref<128x8xf32, #tpu.memory_space<vmem>>, vector<32x8xf32>
    %21 = vector.extract_strided_slice %10 {offsets = [16, 0], sizes = [8, 8], strides = [1, 1]} : vector<32x8xf32> to vector<8x8xf32>
    %cst_18 = arith.constant dense<0.000000e+00> : vector<32x8xf32>
    %22 = tpu.matmul %20, %21, %cst_18 {dimension_numbers = #tpu.dot_dimension_numbers<[1], [0], [0], [1], [0, 0, 1, 1], [], []>} : vector<32x8xf32>, vector<8x8xf32>, vector<32x8xf32> -> vector<32x8xf32>
    %23 = arith.addf %19, %22 : vector<32x8xf32>
    %c96 = arith.constant 96 : index
    %c0_19 = arith.constant 0 : index
    %24 = vector.load %arg7[%c96, %c0_19] : memref<128x8xf32, #tpu.memory_space<vmem>>, vector<32x8xf32>
    %25 = vector.extract_strided_slice %10 {offsets = [24, 0], sizes = [8, 8], strides = [1, 1]} : vector<32x8xf32> to vector<8x8xf32>
    %cst_20 = arith.constant dense<0.000000e+00> : vector<32x8xf32>
    %26 = tpu.matmul %24, %25, %cst_20 {dimension_numbers = #tpu.dot_dimension_numbers<[1], [0], [0], [1], [0, 0, 1, 1], [], []>} : vector<32x8xf32>, vector<8x8xf32>, vector<32x8xf32> -> vector<32x8xf32>
    %27 = arith.addf %23, %26 : vector<32x8xf32>
    %c1 = arith.constant 1 : index
    %c0_21 = arith.constant 0 : index
    %28 = vector.load %arg4[%c1, %c0_21] : memref<4x8xf32, #tpu.memory_space<vmem>>, vector<1x8xf32>
    %29 = vector.broadcast %28 : vector<1x8xf32> to vector<32x8xf32>
    %30 = arith.addf %27, %29 : vector<32x8xf32>
    %cst_22 = arith.constant 0.000000e+00 : f32
    %31 = vector.broadcast %cst_22 : f32 to vector<32x8xf32>
    %32 = arith.maximumf %30, %31 : vector<32x8xf32>
    %c0_23 = arith.constant 0 : index
    %c0_24 = arith.constant 0 : index
    %33 = vector.load %arg7[%c0_23, %c0_24] : memref<128x8xf32, #tpu.memory_space<vmem>>, vector<32x8xf32>
    tpu.vector_store %arg7[%c0_23, %c0_24], %32 {strides = array<i32>} : memref<128x8xf32, #tpu.memory_space<vmem>>, vector<32x8xf32>,
    %c1_25 = arith.constant 1 : index
    %c0_26 = arith.constant 0 : index
    %c0_27 = arith.constant 0 : index
    %34 = vector.load %arg3[%c1_25, %c0_26, %c0_27] : memref<3x32x8xf32, #tpu.memory_space<vmem>>, vector<1x32x8xf32>
    %35 = vector.shape_cast %34 : vector<1x32x8xf32> to vector<32x8xf32>
    %cst_28 = arith.constant 0.000000e+00 : f32
    %36 = vector.broadcast %cst_28 : f32 to vector<8x8xf32>
    %c0_29 = arith.constant 0 : index
    %c0_30 = arith.constant 0 : index
    %37 = vector.load %arg7[%c0_29, %c0_30] : memref<128x8xf32, #tpu.memory_space<vmem>>, vector<8x8xf32>
    %38 = vector.extract_strided_slice %35 {offsets = [0, 0], sizes = [8, 8], strides = [1, 1]} : vector<32x8xf32> to vector<8x8xf32>
    %cst_31 = arith.constant dense<0.000000e+00> : vector<8x8xf32>
    %39 = tpu.matmul %37, %38, %cst_31 {dimension_numbers = #tpu.dot_dimension_numbers<[1], [0], [0], [1], [0, 0, 1, 1], [], []>} : vector<8x8xf32>, vector<8x8xf32>, vector<8x8xf32> -> vector<8x8xf32>
    %40 = arith.addf %36, %39 : vector<8x8xf32>
    %c8 = arith.constant 8 : index
    %c0_32 = arith.constant 0 : index
    %41 = vector.load %arg7[%c8, %c0_32] : memref<128x8xf32, #tpu.memory_space<vmem>>, vector<8x8xf32>
    %42 = vector.extract_strided_slice %35 {offsets = [8, 0], sizes = [8, 8], strides = [1, 1]} : vector<32x8xf32> to vector<8x8xf32>
    %cst_33 = arith.constant dense<0.000000e+00> : vector<8x8xf32>
    %43 = tpu.matmul %41, %42, %cst_33 {dimension_numbers = #tpu.dot_dimension_numbers<[1], [0], [0], [1], [0, 0, 1, 1], [], []>} : vector<8x8xf32>, vector<8x8xf32>, vector<8x8xf32> -> vector<8x8xf32>
    %44 = arith.addf %40, %43 : vector<8x8xf32>
    %c16 = arith.constant 16 : index
    %c0_34 = arith.constant 0 : index
    %45 = vector.load %arg7[%c16, %c0_34] : memref<128x8xf32, #tpu.memory_space<vmem>>, vector<8x8xf32>
    %46 = vector.extract_strided_slice %35 {offsets = [16, 0], sizes = [8, 8], strides = [1, 1]} : vector<32x8xf32> to vector<8x8xf32>
    %cst_35 = arith.constant dense<0.000000e+00> : vector<8x8xf32>
    %47 = tpu.matmul %45, %46, %cst_35 {dimension_numbers = #tpu.dot_dimension_numbers<[1], [0], [0], [1], [0, 0, 1, 1], [], []>} : vector<8x8xf32>, vector<8x8xf32>, vector<8x8xf32> -> vector<8x8xf32>
    %48 = arith.addf %44, %47 : vector<8x8xf32>
    %c24 = arith.constant 24 : index
    %c0_36 = arith.constant 0 : index
    %49 = vector.load %arg7[%c24, %c0_36] : memref<128x8xf32, #tpu.memory_space<vmem>>, vector<8x8xf32>
    %50 = vector.extract_strided_slice %35 {offsets = [24, 0], sizes = [8, 8], strides = [1, 1]} : vector<32x8xf32> to vector<8x8xf32>
    %cst_37 = arith.constant dense<0.000000e+00> : vector<8x8xf32>
    %51 = tpu.matmul %49, %50, %cst_37 {dimension_numbers = #tpu.dot_dimension_numbers<[1], [0], [0], [1], [0, 0, 1, 1], [], []>} : vector<8x8xf32>, vector<8x8xf32>, vector<8x8xf32> -> vector<8x8xf32>
    %52 = arith.addf %48, %51 : vector<8x8xf32>
    %c2 = arith.constant 2 : index
    %c0_38 = arith.constant 0 : index
    %53 = vector.load %arg4[%c2, %c0_38] : memref<4x8xf32, #tpu.memory_space<vmem>>, vector<1x8xf32>
    %54 = vector.broadcast %53 : vector<1x8xf32> to vector<8x8xf32>
    %55 = arith.addf %52, %54 : vector<8x8xf32>
    %cst_39 = arith.constant 0.000000e+00 : f32
    %56 = vector.broadcast %cst_39 : f32 to vector<8x8xf32>
    %57 = arith.maximumf %55, %56 : vector<8x8xf32>
    %c0_40 = arith.constant 0 : index
    %c0_41 = arith.constant 0 : index
    %58 = vector.load %arg7[%c0_40, %c0_41] : memref<128x8xf32, #tpu.memory_space<vmem>>, vector<8x8xf32>
    tpu.vector_store %arg7[%c0_40, %c0_41], %57 {strides = array<i32>} : memref<128x8xf32, #tpu.memory_space<vmem>>, vector<8x8xf32>,
    %c2_42 = arith.constant 2 : index
    %c0_43 = arith.constant 0 : index
    %c0_44 = arith.constant 0 : index
    %59 = vector.load %arg3[%c2_42, %c0_43, %c0_44] : memref<3x32x8xf32, #tpu.memory_space<vmem>>, vector<1x32x8xf32>
    %60 = vector.shape_cast %59 : vector<1x32x8xf32> to vector<32x8xf32>
    %cst_45 = arith.constant 0.000000e+00 : f32
    %61 = vector.broadcast %cst_45 : f32 to vector<2x8xf32>
    %c0_46 = arith.constant 0 : index
    %c0_47 = arith.constant 0 : index
    %62 = vector.load %arg7[%c0_46, %c0_47] : memref<128x8xf32, #tpu.memory_space<vmem>>, vector<2x8xf32>
    %63 = vector.extract_strided_slice %60 {offsets = [0, 0], sizes = [8, 8], strides = [1, 1]} : vector<32x8xf32> to vector<8x8xf32>
    %cst_48 = arith.constant dense<0.000000e+00> : vector<2x8xf32>
    %64 = tpu.matmul %62, %63, %cst_48 {dimension_numbers = #tpu.dot_dimension_numbers<[1], [0], [0], [1], [0, 0, 1, 1], [], []>} : vector<2x8xf32>, vector<8x8xf32>, vector<2x8xf32> -> vector<2x8xf32>
    %65 = arith.addf %61, %64 : vector<2x8xf32>
    %c2_49 = arith.constant 2 : index
    %c0_50 = arith.constant 0 : index
    %66 = vector.load %arg7[%c2_49, %c0_50] : memref<128x8xf32, #tpu.memory_space<vmem>>, vector<2x8xf32>
    %67 = vector.extract_strided_slice %60 {offsets = [8, 0], sizes = [8, 8], strides = [1, 1]} : vector<32x8xf32> to vector<8x8xf32>
    %cst_51 = arith.constant dense<0.000000e+00> : vector<2x8xf32>
    %68 = tpu.matmul %66, %67, %cst_51 {dimension_numbers = #tpu.dot_dimension_numbers<[1], [0], [0], [1], [0, 0, 1, 1], [], []>} : vector<2x8xf32>, vector<8x8xf32>, vector<2x8xf32> -> vector<2x8xf32>
    %69 = arith.addf %65, %68 : vector<2x8xf32>
    %c4 = arith.constant 4 : index
    %c0_52 = arith.constant 0 : index
    %70 = vector.load %arg7[%c4, %c0_52] : memref<128x8xf32, #tpu.memory_space<vmem>>, vector<2x8xf32>
    %71 = vector.extract_strided_slice %60 {offsets = [16, 0], sizes = [8, 8], strides = [1, 1]} : vector<32x8xf32> to vector<8x8xf32>
    %cst_53 = arith.constant dense<0.000000e+00> : vector<2x8xf32>
    %72 = tpu.matmul %70, %71, %cst_53 {dimension_numbers = #tpu.dot_dimension_numbers<[1], [0], [0], [1], [0, 0, 1, 1], [], []>} : vector<2x8xf32>, vector<8x8xf32>, vector<2x8xf32> -> vector<2x8xf32>
    %73 = arith.addf %69, %72 : vector<2x8xf32>
    %c6 = arith.constant 6 : index
    %c0_54 = arith.constant 0 : index
    %74 = vector.load %arg7[%c6, %c0_54] : memref<128x8xf32, #tpu.memory_space<vmem>>, vector<2x8xf32>
    %75 = vector.extract_strided_slice %60 {offsets = [24, 0], sizes = [8, 8], strides = [1, 1]} : vector<32x8xf32> to vector<8x8xf32>
    %cst_55 = arith.constant dense<0.000000e+00> : vector<2x8xf32>
    %76 = tpu.matmul %74, %75, %cst_55 {dimension_numbers = #tpu.dot_dimension_numbers<[1], [0], [0], [1], [0, 0, 1, 1], [], []>} : vector<2x8xf32>, vector<8x8xf32>, vector<2x8xf32> -> vector<2x8xf32>
    %77 = arith.addf %73, %76 : vector<2x8xf32>
    %c3 = arith.constant 3 : index
    %c0_56 = arith.constant 0 : index
    %78 = vector.load %arg4[%c3, %c0_56] : memref<4x8xf32, #tpu.memory_space<vmem>>, vector<1x8xf32>
    %79 = vector.broadcast %78 : vector<1x8xf32> to vector<2x8xf32>
    %80 = arith.addf %77, %79 : vector<2x8xf32>
    %cst_57 = arith.constant 0.000000e+00 : f32
    %81 = vector.broadcast %cst_57 : f32 to vector<2x8xf32>
    %82 = arith.maximumf %80, %81 : vector<2x8xf32>
    %c0_58 = arith.constant 0 : index
    %c0_59 = arith.constant 0 : index
    %83 = vector.load %arg5[%c0_58, %c0_59] : memref<2x2xf32, #tpu.memory_space<vmem>>, vector<2x2xf32>
    %cst_60 = arith.constant dense<0.000000e+00> : vector<2x8xf32>
    %84 = tpu.matmul %83, %82, %cst_60 {dimension_numbers = #tpu.dot_dimension_numbers<[1], [0], [0], [1], [0, 0, 1, 1], [], []>} : vector<2x2xf32>, vector<2x8xf32>, vector<2x8xf32> -> vector<2x8xf32>
    %c0_61 = arith.constant 0 : index
    %c0_62 = arith.constant 0 : index
    %85 = vector.load %arg6[%c0_61, %c0_62] : memref<2x8xf32, #tpu.memory_space<vmem>>, vector<2x8xf32>
    tpu.vector_store %arg6[%c0_61, %c0_62], %84 {strides = array<i32>} : memref<2x8xf32, #tpu.memory_space<vmem>>, vector<2x8xf32>,
    return
  }
  func.func @transform_0(%arg0: i32) -> (i32, i32) {
    %c0_i32 = arith.constant 0 : i32
    %c0_i32_0 = arith.constant 0 : i32
    return %arg0, %c0_i32 : i32, i32
  }
  func.func @transform_1(%arg0: i32) -> (i32, i32) {
    %c0_i32 = arith.constant 0 : i32
    %c0_i32_0 = arith.constant 0 : i32
    %c0_i32_1 = arith.constant 0 : i32
    return %c0_i32, %c0_i32_0 : i32, i32
  }
  func.func @transform_2(%arg0: i32) -> (i32, i32, i32) {
    %c0_i32 = arith.constant 0 : i32
    %c0_i32_0 = arith.constant 0 : i32
    %c0_i32_1 = arith.constant 0 : i32
    %c0_i32_2 = arith.constant 0 : i32
    return %c0_i32, %c0_i32_0, %c0_i32_1 : i32, i32, i32
  }
  func.func @transform_3(%arg0: i32) -> (i32, i32) {
    %c0_i32 = arith.constant 0 : i32
    %c0_i32_0 = arith.constant 0 : i32
    %c0_i32_1 = arith.constant 0 : i32
    return %c0_i32, %c0_i32_0 : i32, i32
  }
  func.func @transform_4(%arg0: i32) -> (i32, i32) {
    %c0_i32 = arith.constant 0 : i32
    %c0_i32_0 = arith.constant 0 : i32
    %c0_i32_1 = arith.constant 0 : i32
    return %c0_i32, %c0_i32_0 : i32, i32
  }
  func.func @transform_5(%arg0: i32) -> (i32, i32) {
    %c0_i32 = arith.constant 0 : i32
    %c0_i32_0 = arith.constant 0 : i32
    return %arg0, %c0_i32 : i32, i32
  }
}

</mosaic_0001>

<llo_original>
// kernel: encoder_forward.1
$region0: #{encoder_forward.1}
  #allocation0 [shape = 'u32[]', space=smem, size = 0x4, offset = 0x4, fixed_abs, tag = 'smem constant byte address 0x4 - core index']
  #allocation1 [shape = 'u32[144,128]{1,0:T(1,128)}', space=vmem, size = 0x12000, scoped, tag = 'internal scratch']
  #allocation2 [shape = 'f32[128,8]{1,0:T(8,128)}', space=vmem, size = 0x10000, scoped, tag = 'scratch operand']
  %s0 = inlined_call_operand.vmem [shape: f32[128,4], index: 0, kind: input, shape index: {}]
  %s1 = inlined_call_operand.vmem [shape: f32[4,8], index: 1, kind: input, shape index: {}]
  %s2 = inlined_call_operand.vmem [shape: f32[3,32,8], index: 2, kind: input, shape index: {}]
  %s3 = inlined_call_operand.vmem [shape: f32[4,8], index: 3, kind: input, shape index: {}]
  %s4 = inlined_call_operand.vmem [shape: f32[2,2], index: 4, kind: input, shape index: {}]
  %s5 = inlined_call_operand.hbm [shape: f32[2,8], index: 5, kind: output, shape index: {}]
  %s6 = sld [smem:[#allocation0]]
  $region30: #{encoder_forward.1} parent=0
    _
  %s8 = ssub.s32 1, %s6
  %s9 = scalar_select 0, %s8, %s6
  $region1: #{encoder_forward.1} parent=0
    #allocation3 [shape = 'u8[1024]{0}', space=vmem, size = 0x400, scoped, tag = 'output window, operand 0, single buffered']
    #allocation4 [shape = 's32[1]{0}', space=sflag, size = 0x4, scoped, tag = 'scoped memory for encoder_forward.1']
    %10 = vsyncpa [#allocation4], 0
    // Predicated region
    $region2: #{encoder_forward.1} parent=1 // pred_check
      _
    $region3: #{encoder_forward.1} parent=1 // pred_check_branch
      %12 = sbr.rel (0) target = $region5
    $region4: #{encoder_forward.1} parent=1 // pred_region
      _
    $region5: #{encoder_forward.1} parent=1 // pred_fallthru
      _
    // Predicated region
    $region6: #{encoder_forward.1} parent=1 // pred_check
      _
    $region7: #{encoder_forward.1} parent=1 // pred_check_branch
      %14 = sbr.rel (0) target = $region9
    $region8: #{encoder_forward.1} parent=1 // pred_region
      _
    $region9: #{encoder_forward.1} parent=1 // pred_fallthru
      _
    // Predicated region
    $region10: #{encoder_forward.1} parent=1 // pred_check
      _
    $region11: #{encoder_forward.1} parent=1 // pred_check_branch
      %16 = sbr.rel (0) target = $region13
    $region12: #{encoder_forward.1} parent=1 // pred_region
      _
    $region13: #{encoder_forward.1} parent=1 // pred_fallthru
      _
    // Predicated region
    $region14: #{encoder_forward.1} parent=1 // pred_check
      _
    $region15: #{encoder_forward.1} parent=1 // pred_check_branch
      %18 = sbr.rel (0) target = $region17
    $region16: #{encoder_forward.1} parent=1 // pred_region
      _
    $region17: #{encoder_forward.1} parent=1 // pred_fallthru
      _
    // Predicated region
    $region18: #{encoder_forward.1} parent=1 // pred_check
      _
    $region19: #{encoder_forward.1} parent=1 // pred_check_branch
      %20 = sbr.rel (0) target = $region21
    $region20: #{encoder_forward.1} parent=1 // pred_region
      _
    $region21: #{encoder_forward.1} parent=1 // pred_fallthru
      _
    %v21 = vld [vmem:[%s0] sm:$0xff]
    %v22 = vld [vmem:[%s0 + $0x8] sm:$0xff]
    %v23 = vld [vmem:[%s0 + $0x10] sm:$0xff]
    %v24 = vld [vmem:[%s0 + $0x18] sm:$0xff]
    %v25 = vld [vmem:[%s0 + $0x20] sm:$0xff]
    %v26 = vld [vmem:[%s0 + $0x28] sm:$0xff]
    %v27 = vld [vmem:[%s0 + $0x30] sm:$0xff]
    %v28 = vld [vmem:[%s0 + $0x38] sm:$0xff]
    %v29 = vld [vmem:[%s0 + $0x40] sm:$0xff]
    %v30 = vld [vmem:[%s0 + $0x48] sm:$0xff]
    %v31 = vld [vmem:[%s0 + $0x50] sm:$0xff]
    %v32 = vld [vmem:[%s0 + $0x58] sm:$0xff]
    %v33 = vld [vmem:[%s0 + $0x60] sm:$0xff]
    %v34 = vld [vmem:[%s0 + $0x68] sm:$0xff]
    %v35 = vld [vmem:[%s0 + $0x70] sm:$0xff]
    %v36 = vld [vmem:[%s0 + $0x78] sm:$0xff]
    %v37 = vld [vmem:[%s1] sm:$0xf]
    %v38 = vld [vmem:[%s3] sm:$0x1]
    %v39 = vlaneseq
    %v40 = vshrl.u32 %v39, 7
    %v41 = vsub.s32 0, %v40
    %v42 = vrot.slane %v38, %v41
    %vm43 = vcmask 31744
    %v45 = vsel %vm43, %v21, 0
    %v48 = vsel %vm43, %v22, 0
    %v51 = vsel %vm43, %v23, 0
    %v54 = vsel %vm43, %v24, 0
    %v57 = vsel %vm43, %v25, 0
    %v60 = vsel %vm43, %v26, 0
    %v63 = vsel %vm43, %v27, 0
    %v66 = vsel %vm43, %v28, 0
    %v69 = vsel %vm43, %v29, 0
    %v72 = vsel %vm43, %v30, 0
    %v75 = vsel %vm43, %v31, 0
    %v78 = vsel %vm43, %v32, 0
    %v81 = vsel %vm43, %v33, 0
    %v84 = vsel %vm43, %v34, 0
    %v87 = vsel %vm43, %v35, 0
    %v90 = vsel %vm43, %v36, 0
    %vm92 = vcmask 1043456
    %v94 = vsel %vm92, %v37, 0
    %96 = vmatprep.subr.mxu0 0.0
    %97 = vmatpush1.msra.mxu0 0.0
    %98 = vmatprep.subr.mxu0 0.0
    %99 = vmatpush1.msra.mxu0 0.0
    %100 = vmatprep.subr.mxu0 0.0
    %101 = vmatpush1.msra.mxu0 0.0
    %102 = vmatprep.subr.mxu0 0.0
    %103 = vmatpush1.msra.mxu0 0.0
    %104 = vmatprep.subr.mxu0 0.0
    %105 = vmatpush1.msra.mxu0 0.0
    %106 = vmatprep.subr.mxu0 0.0
    %107 = vmatpush1.msra.mxu0 0.0
    %108 = vmatprep.subr.mxu0 0.0
    %109 = vmatpush1.msra.mxu0 0.0
    %110 = vmatprep.subr.mxu0 0.0
    %111 = vmatpush1.msra.mxu0 0.0
    %112 = vmatprep.subr.mxu0 0.0
    %113 = vmatpush1.msra.mxu0 0.0
    %114 = vmatprep.subr.mxu0 0.0
    %115 = vmatpush1.msra.mxu0 0.0
    %116 = vmatprep.subr.mxu0 0.0
    %117 = vmatpush1.msra.mxu0 0.0
    %118 = vmatprep.subr.mxu0 0.0
    %119 = vmatpush1.msra.mxu0 0.0
    %120 = vmatprep.subr.mxu0 0.0
    %121 = vmatpush1.msra.mxu0 0.0
    %122 = vmatprep.subr.mxu0 0.0
    %123 = vmatpush1.msra.mxu0 0.0
    %124 = vmatprep.subr.mxu0 0.0
    %125 = vmatpush1.msra.mxu0 0.0
    %126 = vmatprep.subr.mxu0 0.0
    %127 = vmatpush1.msra.mxu0 %v94
    %128 = vmatprep.subr.mxu0 0.0
    %129 = vmatpush2.msra.mxu0 0.0
    %130 = vmatprep.subr.mxu0 0.0
    %131 = vmatpush2.msra.mxu0 0.0
    %132 = vmatprep.subr.mxu0 0.0
    %133 = vmatpush2.msra.mxu0 0.0
    %134 = vmatprep.subr.mxu0 0.0
    %135 = vmatpush2.msra.mxu0 0.0
    %136 = vmatprep.subr.mxu0 0.0
    %137 = vmatpush2.msra.mxu0 0.0
    %138 = vmatprep.subr.mxu0 0.0
    %139 = vmatpush2.msra.mxu0 0.0
    %140 = vmatprep.subr.mxu0 0.0
    %141 = vmatpush2.msra.mxu0 0.0
    %142 = vmatprep.subr.mxu0 0.0
    %143 = vmatpush2.msra.mxu0 0.0
    %144 = vmatprep.subr.mxu0 0.0
    %145 = vmatpush2.msra.mxu0 0.0
    %146 = vmatprep.subr.mxu0 0.0
    %147 = vmatpush2.msra.mxu0 0.0
    %148 = vmatprep.subr.mxu0 0.0
    %149 = vmatpush2.msra.mxu0 0.0
    %150 = vmatprep.subr.mxu0 0.0
    %151 = vmatpush2.msra.mxu0 0.0
    %152 = vmatprep.subr.mxu0 0.0
    %153 = vmatpush2.msra.mxu0 0.0
    %154 = vmatprep.subr.mxu0 0.0
    %155 = vmatpush2.msra.mxu0 0.0
    %156 = vmatprep.subr.mxu0 0.0
    %157 = vmatpush2.msra.mxu0 0.0
    %158 = vmatprep.subr.mxu0 0.0
    %159 = vmatpush2.msra.mxu0 0.0
    %160 = vmatprep.mubr.f32.mxu0 0.0
    %161 = vmatmul.mubr.f32.gmra.mxu0 %v45
    %v162 = vpop.f32.mrf.mxu0
    %v163 = vadd.f32 %v42, %v162
    %v164 = vpop.f32.mrf.mxu0
    %165 = vmatprep.mubr.f32.mxu0 0.0
    %166 = vmatmul.mubr.f32.gmra.mxu0 %v48
    %v167 = vpop.f32.mrf.mxu0
    %v168 = vadd.f32 %v42, %v167
    %v169 = vpop.f32.mrf.mxu0
    %170 = vmatprep.mubr.f32.mxu0 0.0
    %171 = vmatmul.mubr.f32.gmra.mxu0 %v51
    %v172 = vpop.f32.mrf.mxu0
    %v173 = vadd.f32 %v42, %v172
    %v174 = vpop.f32.mrf.mxu0
    %175 = vmatprep.mubr.f32.mxu0 0.0
    %176 = vmatmul.mubr.f32.gmra.mxu0 %v54
    %v177 = vpop.f32.mrf.mxu0
    %v178 = vadd.f32 %v42, %v177
    %v179 = vpop.f32.mrf.mxu0
    %180 = vmatprep.mubr.f32.mxu0 0.0
    %181 = vmatmul.mubr.f32.gmra.mxu0 %v57
    %v182 = vpop.f32.mrf.mxu0
    %v183 = vadd.f32 %v42, %v182
    %v184 = vpop.f32.mrf.mxu0
    %185 = vmatprep.mubr.f32.mxu0 0.0
    %186 = vmatmul.mubr.f32.gmra.mxu0 %v60
    %v187 = vpop.f32.mrf.mxu0
    %v188 = vadd.f32 %v42, %v187
    %v189 = vpop.f32.mrf.mxu0
    %190 = vmatprep.mubr.f32.mxu0 0.0
    %191 = vmatmul.mubr.f32.gmra.mxu0 %v63
    %v192 = vpop.f32.mrf.mxu0
    %v193 = vadd.f32 %v42, %v192
    %v194 = vpop.f32.mrf.mxu0
    %195 = vmatprep.mubr.f32.mxu0 0.0
    %196 = vmatmul.mubr.f32.gmra.mxu0 %v66
    %v197 = vpop.f32.mrf.mxu0
    %v198 = vadd.f32 %v42, %v197
    %v199 = vpop.f32.mrf.mxu0
    %200 = vmatprep.mubr.f32.mxu0 0.0
    %201 = vmatmul.mubr.f32.gmra.mxu0 %v69
    %v202 = vpop.f32.mrf.mxu0
    %v203 = vadd.f32 %v42, %v202
    %v204 = vpop.f32.mrf.mxu0
    %205 = vmatprep.mubr.f32.mxu0 0.0
    %206 = vmatmul.mubr.f32.gmra.mxu0 %v72
    %v207 = vpop.f32.mrf.mxu0
    %v208 = vadd.f32 %v42, %v207
    %v209 = vpop.f32.mrf.mxu0
    %210 = vmatprep.mubr.f32.mxu0 0.0
    %211 = vmatmul.mubr.f32.gmra.mxu0 %v75
    %v212 = vpop.f32.mrf.mxu0
    %v213 = vadd.f32 %v42, %v212
    %v214 = vpop.f32.mrf.mxu0
    %215 = vmatprep.mubr.f32.mxu0 0.0
    %216 = vmatmul.mubr.f32.gmra.mxu0 %v78
    %v217 = vpop.f32.mrf.mxu0
    %v218 = vadd.f32 %v42, %v217
    %v219 = vpop.f32.mrf.mxu0
    %220 = vmatprep.mubr.f32.mxu0 0.0
    %221 = vmatmul.mubr.f32.gmra.mxu0 %v81
    %v222 = vpop.f32.mrf.mxu0
    %v223 = vadd.f32 %v42, %v222
    %v224 = vpop.f32.mrf.mxu0
    %225 = vmatprep.mubr.f32.mxu0 0.0
    %226 = vmatmul.mubr.f32.gmra.mxu0 %v84
    %v227 = vpop.f32.mrf.mxu0
    %v228 = vadd.f32 %v42, %v227
    %v229 = vpop.f32.mrf.mxu0
    %230 = vmatprep.mubr.f32.mxu0 0.0
    %231 = vmatmul.mubr.f32.gmra.mxu0 %v87
    %v232 = vpop.f32.mrf.mxu0
    %v233 = vadd.f32 %v42, %v232
    %v234 = vpop.f32.mrf.mxu0
    %235 = vmatprep.mubr.f32.mxu0 0.0
    %236 = vmatmul.mubr.f32.gmra.mxu0 %v90
    %v237 = vpop.f32.mrf.mxu0
    %v238 = vadd.f32 %v42, %v237
    %v239 = vpop.f32.mrf.mxu0
    %240 = vdwg.mxu0
    %v241 = vmax.f32 %v163, 0.0
    %v242 = vmax.f32 %v168, 0.0
    %v243 = vmax.f32 %v173, 0.0
    %v244 = vmax.f32 %v178, 0.0
    %v245 = vmax.f32 %v183, 0.0
    %v246 = vmax.f32 %v188, 0.0
    %v247 = vmax.f32 %v193, 0.0
    %v248 = vmax.f32 %v198, 0.0
    %v249 = vmax.f32 %v203, 0.0
    %v250 = vmax.f32 %v208, 0.0
    %v251 = vmax.f32 %v213, 0.0
    %v252 = vmax.f32 %v218, 0.0
    %v253 = vmax.f32 %v223, 0.0
    %v254 = vmax.f32 %v228, 0.0
    %v255 = vmax.f32 %v233, 0.0
    %v256 = vmax.f32 %v238, 0.0
    %vm257 = vcmask 64512
    %258 = vst.msk [vmem:[#allocation2] sm:$0xff] %vm257, %v241
    %259 = vst.msk [vmem:[#allocation2 + $0x8] sm:$0xff] %vm257, %v242
    %260 = vst.msk [vmem:[#allocation2 + $0x10] sm:$0xff] %vm257, %v243
    %261 = vst.msk [vmem:[#allocation2 + $0x18] sm:$0xff] %vm257, %v244
    %262 = vst.msk [vmem:[#allocation2 + $0x20] sm:$0xff] %vm257, %v245
    %263 = vst.msk [vmem:[#allocation2 + $0x28] sm:$0xff] %vm257, %v246
    %264 = vst.msk [vmem:[#allocation2 + $0x30] sm:$0xff] %vm257, %v247
    %265 = vst.msk [vmem:[#allocation2 + $0x38] sm:$0xff] %vm257, %v248
    %266 = vst.msk [vmem:[#allocation2 + $0x40] sm:$0xff] %vm257, %v249
    %267 = vst.msk [vmem:[#allocation2 + $0x48] sm:$0xff] %vm257, %v250
    %268 = vst.msk [vmem:[#allocation2 + $0x50] sm:$0xff] %vm257, %v251
    %269 = vst.msk [vmem:[#allocation2 + $0x58] sm:$0xff] %vm257, %v252
    %270 = vst.msk [vmem:[#allocation2 + $0x60] sm:$0xff] %vm257, %v253
    %271 = vst.msk [vmem:[#allocation2 + $0x68] sm:$0xff] %vm257, %v254
    %272 = vst.msk [vmem:[#allocation2 + $0x70] sm:$0xff] %vm257, %v255
    %273 = vst.msk [vmem:[#allocation2 + $0x78] sm:$0xff] %vm257, %v256
    %v274 = vld [vmem:[%s2] sm:$0xff]
    %v275 = vld [vmem:[%s2 + $0x8] sm:$0xff]
    %v276 = vld [vmem:[%s2 + $0x10] sm:$0xff]
    %v277 = vld [vmem:[%s2 + $0x18] sm:$0xff]
    %v278 = vld [vmem:[#allocation2] sm:$0xff]
    %v279 = vld [vmem:[#allocation2 + $0x8] sm:$0xff]
    %v280 = vld [vmem:[#allocation2 + $0x10] sm:$0xff]
    %v281 = vld [vmem:[#allocation2 + $0x18] sm:$0xff]
    %v282 = vld [vmem:[#allocation2 + $0x20] sm:$0xff]
    %v283 = vld [vmem:[#allocation2 + $0x28] sm:$0xff]
    %v284 = vld [vmem:[#allocation2 + $0x30] sm:$0xff]
    %v285 = vld [vmem:[#allocation2 + $0x38] sm:$0xff]
    %v287 = vsel %vm257, %v282, 0
    %v290 = vsel %vm257, %v283, 0
    %v293 = vsel %vm257, %v284, 0
    %v296 = vsel %vm257, %v285, 0
    %298 = vmatprep.subr.mxu0 0.0
    %299 = vmatpush1.msra.mxu0 0.0
    %300 = vmatprep.subr.mxu0 0.0
    %301 = vmatpush1.msra.mxu0 0.0
    %302 = vmatprep.subr.mxu0 0.0
    %303 = vmatpush1.msra.mxu0 0.0
    %304 = vmatprep.subr.mxu0 0.0
    %305 = vmatpush1.msra.mxu0 0.0
    %306 = vmatprep.subr.mxu0 0.0
    %307 = vmatpush1.msra.mxu0 0.0
    %308 = vmatprep.subr.mxu0 0.0
    %309 = vmatpush1.msra.mxu0 0.0
    %310 = vmatprep.subr.mxu0 0.0
    %311 = vmatpush1.msra.mxu0 0.0
    %312 = vmatprep.subr.mxu0 0.0
    %313 = vmatpush1.msra.mxu0 0.0
    %314 = vmatprep.subr.mxu0 0.0
    %315 = vmatpush1.msra.mxu0 0.0
    %316 = vmatprep.subr.mxu0 0.0
    %317 = vmatpush1.msra.mxu0 0.0
    %318 = vmatprep.subr.mxu0 0.0
    %319 = vmatpush1.msra.mxu0 0.0
    %320 = vmatprep.subr.mxu0 0.0
    %321 = vmatpush1.msra.mxu0 0.0
    %322 = vmatprep.subr.mxu0 0.0
    %323 = vmatpush1.msra.mxu0 0.0
    %324 = vmatprep.subr.mxu0 0.0
    %325 = vmatpush1.msra.mxu0 0.0
    %326 = vmatprep.subr.mxu0 0.0
    %327 = vmatpush1.msra.mxu0 0.0
    %328 = vmatprep.subr.mxu0 0.0
    %329 = vmatpush1.msra.mxu0 %v275
    %330 = vmatprep.subr.mxu0 0.0
    %331 = vmatpush2.msra.mxu0 0.0
    %332 = vmatprep.subr.mxu0 0.0
    %333 = vmatpush2.msra.mxu0 0.0
    %334 = vmatprep.subr.mxu0 0.0
    %335 = vmatpush2.msra.mxu0 0.0
    %336 = vmatprep.subr.mxu0 0.0
    %337 = vmatpush2.msra.mxu0 0.0
    %338 = vmatprep.subr.mxu0 0.0
    %339 = vmatpush2.msra.mxu0 0.0
    %340 = vmatprep.subr.mxu0 0.0
    %341 = vmatpush2.msra.mxu0 0.0
    %342 = vmatprep.subr.mxu0 0.0
    %343 = vmatpush2.msra.mxu0 0.0
    %344 = vmatprep.subr.mxu0 0.0
    %345 = vmatpush2.msra.mxu0 0.0
    %346 = vmatprep.subr.mxu0 0.0
    %347 = vmatpush2.msra.mxu0 0.0
    %348 = vmatprep.subr.mxu0 0.0
    %349 = vmatpush2.msra.mxu0 0.0
    %350 = vmatprep.subr.mxu0 0.0
    %351 = vmatpush2.msra.mxu0 0.0
    %352 = vmatprep.subr.mxu0 0.0
    %353 = vmatpush2.msra.mxu0 0.0
    %354 = vmatprep.subr.mxu0 0.0
    %355 = vmatpush2.msra.mxu0 0.0
    %356 = vmatprep.subr.mxu0 0.0
    %357 = vmatpush2.msra.mxu0 0.0
    %358 = vmatprep.subr.mxu0 0.0
    %359 = vmatpush2.msra.mxu0 0.0
    %360 = vmatprep.subr.mxu0 0.0
    %361 = vmatpush2.msra.mxu0 0.0
    %362 = vmatprep.mubr.f32.mxu0 0.0
    %363 = vmatmul.mubr.f32.gmra.mxu0 %v287
    %v364 = vpop.f32.mrf.mxu0
    %v365 = vadd.f32 0.0, %v364
    %v366 = vpop.f32.mrf.mxu0
    %367 = vmatprep.mubr.f32.mxu0 0.0
    %368 = vmatmul.mubr.f32.gmra.mxu0 %v290
    %v369 = vpop.f32.mrf.mxu0
    %v370 = vadd.f32 0.0, %v369
    %v371 = vpop.f32.mrf.mxu0
    %372 = vmatprep.mubr.f32.mxu0 0.0
    %373 = vmatmul.mubr.f32.gmra.mxu0 %v293
    %v374 = vpop.f32.mrf.mxu0
    %v375 = vadd.f32 0.0, %v374
    %v376 = vpop.f32.mrf.mxu0
    %377 = vmatprep.mubr.f32.mxu0 0.0
    %378 = vmatmul.mubr.f32.gmra.mxu0 %v296
    %v379 = vpop.f32.mrf.mxu0
    %v380 = vadd.f32 0.0, %v379
    %v381 = vpop.f32.mrf.mxu0
    %382 = vdwg.mxu0
    %v384 = vsel %vm257, %v278, 0
    %v387 = vsel %vm257, %v279, 0
    %v390 = vsel %vm257, %v280, 0
    %v393 = vsel %vm257, %v281, 0
    %395 = vmatprep.subr.mxu0 0.0
    %396 = vmatpush1.msra.mxu0 0.0
    %397 = vmatprep.subr.mxu0 0.0
    %398 = vmatpush1.msra.mxu0 0.0
    %399 = vmatprep.subr.mxu0 0.0
    %400 = vmatpush1.msra.mxu0 0.0
    %401 = vmatprep.subr.mxu0 0.0
    %402 = vmatpush1.msra.mxu0 0.0
    %403 = vmatprep.subr.mxu0 0.0
    %404 = vmatpush1.msra.mxu0 0.0
    %405 = vmatprep.subr.mxu0 0.0
    %406 = vmatpush1.msra.mxu0 0.0
    %407 = vmatprep.subr.mxu0 0.0
    %408 = vmatpush1.msra.mxu0 0.0
    %409 = vmatprep.subr.mxu0 0.0
    %410 = vmatpush1.msra.mxu0 0.0
    %411 = vmatprep.subr.mxu0 0.0
    %412 = vmatpush1.msra.mxu0 0.0
    %413 = vmatprep.subr.mxu0 0.0
    %414 = vmatpush1.msra.mxu0 0.0
    %415 = vmatprep.subr.mxu0 0.0
    %416 = vmatpush1.msra.mxu0 0.0
    %417 = vmatprep.subr.mxu0 0.0
    %418 = vmatpush1.msra.mxu0 0.0
    %419 = vmatprep.subr.mxu0 0.0
    %420 = vmatpush1.msra.mxu0 0.0
    %421 = vmatprep.subr.mxu0 0.0
    %422 = vmatpush1.msra.mxu0 0.0
    %423 = vmatprep.subr.mxu0 0.0
    %424 = vmatpush1.msra.mxu0 0.0
    %425 = vmatprep.subr.mxu0 0.0
    %426 = vmatpush1.msra.mxu0 %v274
    %427 = vmatprep.subr.mxu0 0.0
    %428 = vmatpush2.msra.mxu0 0.0
    %429 = vmatprep.subr.mxu0 0.0
    %430 = vmatpush2.msra.mxu0 0.0
    %431 = vmatprep.subr.mxu0 0.0
    %432 = vmatpush2.msra.mxu0 0.0
    %433 = vmatprep.subr.mxu0 0.0
    %434 = vmatpush2.msra.mxu0 0.0
    %435 = vmatprep.subr.mxu0 0.0
    %436 = vmatpush2.msra.mxu0 0.0
    %437 = vmatprep.subr.mxu0 0.0
    %438 = vmatpush2.msra.mxu0 0.0
    %439 = vmatprep.subr.mxu0 0.0
    %440 = vmatpush2.msra.mxu0 0.0
    %441 = vmatprep.subr.mxu0 0.0
    %442 = vmatpush2.msra.mxu0 0.0
    %443 = vmatprep.subr.mxu0 0.0
    %444 = vmatpush2.msra.mxu0 0.0
    %445 = vmatprep.subr.mxu0 0.0
    %446 = vmatpush2.msra.mxu0 0.0
    %447 = vmatprep.subr.mxu0 0.0
    %448 = vmatpush2.msra.mxu0 0.0
    %449 = vmatprep.subr.mxu0 0.0
    %450 = vmatpush2.msra.mxu0 0.0
    %451 = vmatprep.subr.mxu0 0.0
    %452 = vmatpush2.msra.mxu0 0.0
    %453 = vmatprep.subr.mxu0 0.0
    %454 = vmatpush2.msra.mxu0 0.0
    %455 = vmatprep.subr.mxu0 0.0
    %456 = vmatpush2.msra.mxu0 0.0
    %457 = vmatprep.subr.mxu0 0.0
    %458 = vmatpush2.msra.mxu0 0.0
    %459 = vmatprep.mubr.f32.mxu0 0.0
    %460 = vmatmul.mubr.f32.gmra.mxu0 %v384
    %v461 = vpop.f32.mrf.mxu0
    %v462 = vadd.f32 %v365, %v461
    %v463 = vpop.f32.mrf.mxu0
    %464 = vmatprep.mubr.f32.mxu0 0.0
    %465 = vmatmul.mubr.f32.gmra.mxu0 %v387
    %v466 = vpop.f32.mrf.mxu0
    %v467 = vadd.f32 %v370, %v466
    %v468 = vpop.f32.mrf.mxu0
    %469 = vmatprep.mubr.f32.mxu0 0.0
    %470 = vmatmul.mubr.f32.gmra.mxu0 %v390
    %v471 = vpop.f32.mrf.mxu0
    %v472 = vadd.f32 %v375, %v471
    %v473 = vpop.f32.mrf.mxu0
    %474 = vmatprep.mubr.f32.mxu0 0.0
    %475 = vmatmul.mubr.f32.gmra.mxu0 %v393
    %v476 = vpop.f32.mrf.mxu0
    %v477 = vadd.f32 %v380, %v476
    %v478 = vpop.f32.mrf.mxu0
    %479 = vdwg.mxu0
    %v480 = vld [vmem:[#allocation2 + $0x40] sm:$0xff]
    %v481 = vld [vmem:[#allocation2 + $0x48] sm:$0xff]
    %v482 = vld [vmem:[#allocation2 + $0x50] sm:$0xff]
    %v483 = vld [vmem:[#allocation2 + $0x58] sm:$0xff]
    %v485 = vsel %vm257, %v480, 0
    %v488 = vsel %vm257, %v481, 0
    %v491 = vsel %vm257, %v482, 0
    %v494 = vsel %vm257, %v483, 0
    %496 = vmatprep.subr.mxu0 0.0
    %497 = vmatpush1.msra.mxu0 0.0
    %498 = vmatprep.subr.mxu0 0.0
    %499 = vmatpush1.msra.mxu0 0.0
    %500 = vmatprep.subr.mxu0 0.0
    %501 = vmatpush1.msra.mxu0 0.0
    %502 = vmatprep.subr.mxu0 0.0
    %503 = vmatpush1.msra.mxu0 0.0
    %504 = vmatprep.subr.mxu0 0.0
    %505 = vmatpush1.msra.mxu0 0.0
    %506 = vmatprep.subr.mxu0 0.0
    %507 = vmatpush1.msra.mxu0 0.0
    %508 = vmatprep.subr.mxu0 0.0
    %509 = vmatpush1.msra.mxu0 0.0
    %510 = vmatprep.subr.mxu0 0.0
    %511 = vmatpush1.msra.mxu0 0.0
    %512 = vmatprep.subr.mxu0 0.0
    %513 = vmatpush1.msra.mxu0 0.0
    %514 = vmatprep.subr.mxu0 0.0
    %515 = vmatpush1.msra.mxu0 0.0
    %516 = vmatprep.subr.mxu0 0.0
    %517 = vmatpush1.msra.mxu0 0.0
    %518 = vmatprep.subr.mxu0 0.0
    %519 = vmatpush1.msra.mxu0 0.0
    %520 = vmatprep.subr.mxu0 0.0
    %521 = vmatpush1.msra.mxu0 0.0
    %522 = vmatprep.subr.mxu0 0.0
    %523 = vmatpush1.msra.mxu0 0.0
    %524 = vmatprep.subr.mxu0 0.0
    %525 = vmatpush1.msra.mxu0 0.0
    %526 = vmatprep.subr.mxu0 0.0
    %527 = vmatpush1.msra.mxu0 %v276
    %528 = vmatprep.subr.mxu0 0.0
    %529 = vmatpush2.msra.mxu0 0.0
    %530 = vmatprep.subr.mxu0 0.0
    %531 = vmatpush2.msra.mxu0 0.0
    %532 = vmatprep.subr.mxu0 0.0
    %533 = vmatpush2.msra.mxu0 0.0
    %534 = vmatprep.subr.mxu0 0.0
    %535 = vmatpush2.msra.mxu0 0.0
    %536 = vmatprep.subr.mxu0 0.0
    %537 = vmatpush2.msra.mxu0 0.0
    %538 = vmatprep.subr.mxu0 0.0
    %539 = vmatpush2.msra.mxu0 0.0
    %540 = vmatprep.subr.mxu0 0.0
    %541 = vmatpush2.msra.mxu0 0.0
    %542 = vmatprep.subr.mxu0 0.0
    %543 = vmatpush2.msra.mxu0 0.0
    %544 = vmatprep.subr.mxu0 0.0
    %545 = vmatpush2.msra.mxu0 0.0
    %546 = vmatprep.subr.mxu0 0.0
    %547 = vmatpush2.msra.mxu0 0.0
    %548 = vmatprep.subr.mxu0 0.0
    %549 = vmatpush2.msra.mxu0 0.0
    %550 = vmatprep.subr.mxu0 0.0
    %551 = vmatpush2.msra.mxu0 0.0
    %552 = vmatprep.subr.mxu0 0.0
    %553 = vmatpush2.msra.mxu0 0.0
    %554 = vmatprep.subr.mxu0 0.0
    %555 = vmatpush2.msra.mxu0 0.0
    %556 = vmatprep.subr.mxu0 0.0
    %557 = vmatpush2.msra.mxu0 0.0
    %558 = vmatprep.subr.mxu0 0.0
    %559 = vmatpush2.msra.mxu0 0.0
    %560 = vmatprep.mubr.f32.mxu0 0.0
    %561 = vmatmul.mubr.f32.gmra.mxu0 %v485
    %v562 = vpop.f32.mrf.mxu0
    %v563 = vadd.f32 0.0, %v562
    %v564 = vpop.f32.mrf.mxu0
    %565 = vmatprep.mubr.f32.mxu0 0.0
    %566 = vmatmul.mubr.f32.gmra.mxu0 %v488
    %v567 = vpop.f32.mrf.mxu0
    %v568 = vadd.f32 0.0, %v567
    %v569 = vpop.f32.mrf.mxu0
    %570 = vmatprep.mubr.f32.mxu0 0.0
    %571 = vmatmul.mubr.f32.gmra.mxu0 %v491
    %v572 = vpop.f32.mrf.mxu0
    %v573 = vadd.f32 0.0, %v572
    %v574 = vpop.f32.mrf.mxu0
    %575 = vmatprep.mubr.f32.mxu0 0.0
    %576 = vmatmul.mubr.f32.gmra.mxu0 %v494
    %v577 = vpop.f32.mrf.mxu0
    %v578 = vadd.f32 0.0, %v577
    %v579 = vpop.f32.mrf.mxu0
    %580 = vdwg.mxu0
    %v581 = vadd.f32 %v462, %v563
    %v582 = vadd.f32 %v467, %v568
    %v583 = vadd.f32 %v472, %v573
    %v584 = vadd.f32 %v477, %v578
    %v585 = vld [vmem:[#allocation2 + $0x60] sm:$0xff]
    %v586 = vld [vmem:[#allocation2 + $0x68] sm:$0xff]
    %v587 = vld [vmem:[#allocation2 + $0x70] sm:$0xff]
    %v588 = vld [vmem:[#allocation2 + $0x78] sm:$0xff]
    %v590 = vsel %vm257, %v585, 0
    %v593 = vsel %vm257, %v586, 0
    %v596 = vsel %vm257, %v587, 0
    %v599 = vsel %vm257, %v588, 0
    %601 = vmatprep.subr.mxu0 0.0
    %602 = vmatpush1.msra.mxu0 0.0
    %603 = vmatprep.subr.mxu0 0.0
    %604 = vmatpush1.msra.mxu0 0.0
    %605 = vmatprep.subr.mxu0 0.0
    %606 = vmatpush1.msra.mxu0 0.0
    %607 = vmatprep.subr.mxu0 0.0
    %608 = vmatpush1.msra.mxu0 0.0
    %609 = vmatprep.subr.mxu0 0.0
    %610 = vmatpush1.msra.mxu0 0.0
    %611 = vmatprep.subr.mxu0 0.0
    %612 = vmatpush1.msra.mxu0 0.0
    %613 = vmatprep.subr.mxu0 0.0
    %614 = vmatpush1.msra.mxu0 0.0
    %615 = vmatprep.subr.mxu0 0.0
    %616 = vmatpush1.msra.mxu0 0.0
    %617 = vmatprep.subr.mxu0 0.0
    %618 = vmatpush1.msra.mxu0 0.0
    %619 = vmatprep.subr.mxu0 0.0
    %620 = vmatpush1.msra.mxu0 0.0
    %621 = vmatprep.subr.mxu0 0.0
    %622 = vmatpush1.msra.mxu0 0.0
    %623 = vmatprep.subr.mxu0 0.0
    %624 = vmatpush1.msra.mxu0 0.0
    %625 = vmatprep.subr.mxu0 0.0
    %626 = vmatpush1.msra.mxu0 0.0
    %627 = vmatprep.subr.mxu0 0.0
    %628 = vmatpush1.msra.mxu0 0.0
    %629 = vmatprep.subr.mxu0 0.0
    %630 = vmatpush1.msra.mxu0 0.0
    %631 = vmatprep.subr.mxu0 0.0
    %632 = vmatpush1.msra.mxu0 %v277
    %633 = vmatprep.subr.mxu0 0.0
    %634 = vmatpush2.msra.mxu0 0.0
    %635 = vmatprep.subr.mxu0 0.0
    %636 = vmatpush2.msra.mxu0 0.0
    %637 = vmatprep.subr.mxu0 0.0
    %638 = vmatpush2.msra.mxu0 0.0
    %639 = vmatprep.subr.mxu0 0.0
    %640 = vmatpush2.msra.mxu0 0.0
    %641 = vmatprep.subr.mxu0 0.0
    %642 = vmatpush2.msra.mxu0 0.0
    %643 = vmatprep.subr.mxu0 0.0
    %644 = vmatpush2.msra.mxu0 0.0
    %645 = vmatprep.subr.mxu0 0.0
    %646 = vmatpush2.msra.mxu0 0.0
    %647 = vmatprep.subr.mxu0 0.0
    %648 = vmatpush2.msra.mxu0 0.0
    %649 = vmatprep.subr.mxu0 0.0
    %650 = vmatpush2.msra.mxu0 0.0
    %651 = vmatprep.subr.mxu0 0.0
    %652 = vmatpush2.msra.mxu0 0.0
    %653 = vmatprep.subr.mxu0 0.0
    %654 = vmatpush2.msra.mxu0 0.0
    %655 = vmatprep.subr.mxu0 0.0
    %656 = vmatpush2.msra.mxu0 0.0
    %657 = vmatprep.subr.mxu0 0.0
    %658 = vmatpush2.msra.mxu0 0.0
    %659 = vmatprep.subr.mxu0 0.0
    %660 = vmatpush2.msra.mxu0 0.0
    %661 = vmatprep.subr.mxu0 0.0
    %662 = vmatpush2.msra.mxu0 0.0
    %663 = vmatprep.subr.mxu0 0.0
    %664 = vmatpush2.msra.mxu0 0.0
    %665 = vmatprep.mubr.f32.mxu0 0.0
    %666 = vmatmul.mubr.f32.gmra.mxu0 %v590
    %v667 = vpop.f32.mrf.mxu0
    %v668 = vadd.f32 0.0, %v667
    %v669 = vpop.f32.mrf.mxu0
    %670 = vmatprep.mubr.f32.mxu0 0.0
    %671 = vmatmul.mubr.f32.gmra.mxu0 %v593
    %v672 = vpop.f32.mrf.mxu0
    %v673 = vadd.f32 0.0, %v672
    %v674 = vpop.f32.mrf.mxu0
    %675 = vmatprep.mubr.f32.mxu0 0.0
    %676 = vmatmul.mubr.f32.gmra.mxu0 %v596
    %v677 = vpop.f32.mrf.mxu0
    %v678 = vadd.f32 0.0, %v677
    %v679 = vpop.f32.mrf.mxu0
    %680 = vmatprep.mubr.f32.mxu0 0.0
    %681 = vmatmul.mubr.f32.gmra.mxu0 %v599
    %v682 = vpop.f32.mrf.mxu0
    %v683 = vadd.f32 0.0, %v682
    %v684 = vpop.f32.mrf.mxu0
    %685 = vdwg.mxu0
    %v686 = vadd.f32 %v581, %v668
    %v687 = vadd.f32 %v582, %v673
    %v688 = vadd.f32 %v583, %v678
    %v689 = vadd.f32 %v584, %v683
    %v690 = vld [vmem:[%s3 + $0x1] sm:$0x1]
    %v691 = vlaneseq
    %v692 = vshrl.u32 %v691, 7
    %v693 = vsub.s32 0, %v692
    %v694 = vrot.slane %v690, %v693
    %v695 = vadd.f32 %v686, %v694
    %v696 = vadd.f32 %v687, %v694
    %v697 = vadd.f32 %v688, %v694
    %v698 = vadd.f32 %v689, %v694
    %v699 = vmax.f32 %v695, 0.0
    %v700 = vmax.f32 %v696, 0.0
    %v701 = vmax.f32 %v697, 0.0
    %v702 = vmax.f32 %v698, 0.0
    %703 = vst.msk [vmem:[#allocation2] sm:$0xff] %vm257, %v699
    %704 = vst.msk [vmem:[#allocation2 + $0x8] sm:$0xff] %vm257, %v700
    %705 = vst.msk [vmem:[#allocation2 + $0x10] sm:$0xff] %vm257, %v701
    %706 = vst.msk [vmem:[#allocation2 + $0x18] sm:$0xff] %vm257, %v702
    %s707 = scalar_lea.vmem %s2, 32
    %v708 = vld [vmem:[%s707] sm:$0xff]
    %v709 = vld [vmem:[%s707 + $0x8] sm:$0xff]
    %v710 = vld [vmem:[%s707 + $0x10] sm:$0xff]
    %v711 = vld [vmem:[%s707 + $0x18] sm:$0xff]
    %v712 = vld [vmem:[#allocation2] sm:$0xff]
    %v713 = vld [vmem:[#allocation2 + $0x8] sm:$0xff]
    %v715 = vsel %vm257, %v713, 0
    %717 = vmatprep.subr.mxu0 0.0
    %718 = vmatpush1.msra.mxu0 0.0
    %719 = vmatprep.subr.mxu0 0.0
    %720 = vmatpush1.msra.mxu0 0.0
    %721 = vmatprep.subr.mxu0 0.0
    %722 = vmatpush1.msra.mxu0 0.0
    %723 = vmatprep.subr.mxu0 0.0
    %724 = vmatpush1.msra.mxu0 0.0
    %725 = vmatprep.subr.mxu0 0.0
    %726 = vmatpush1.msra.mxu0 0.0
    %727 = vmatprep.subr.mxu0 0.0
    %728 = vmatpush1.msra.mxu0 0.0
    %729 = vmatprep.subr.mxu0 0.0
    %730 = vmatpush1.msra.mxu0 0.0
    %731 = vmatprep.subr.mxu0 0.0
    %732 = vmatpush1.msra.mxu0 0.0
    %733 = vmatprep.subr.mxu0 0.0
    %734 = vmatpush1.msra.mxu0 0.0
    %735 = vmatprep.subr.mxu0 0.0
    %736 = vmatpush1.msra.mxu0 0.0
    %737 = vmatprep.subr.mxu0 0.0
    %738 = vmatpush1.msra.mxu0 0.0
    %739 = vmatprep.subr.mxu0 0.0
    %740 = vmatpush1.msra.mxu0 0.0
    %741 = vmatprep.subr.mxu0 0.0
    %742 = vmatpush1.msra.mxu0 0.0
    %743 = vmatprep.subr.mxu0 0.0
    %744 = vmatpush1.msra.mxu0 0.0
    %745 = vmatprep.subr.mxu0 0.0
    %746 = vmatpush1.msra.mxu0 0.0
    %747 = vmatprep.subr.mxu0 0.0
    %748 = vmatpush1.msra.mxu0 %v709
    %749 = vmatprep.subr.mxu0 0.0
    %750 = vmatpush2.msra.mxu0 0.0
    %751 = vmatprep.subr.mxu0 0.0
    %752 = vmatpush2.msra.mxu0 0.0
    %753 = vmatprep.subr.mxu0 0.0
    %754 = vmatpush2.msra.mxu0 0.0
    %755 = vmatprep.subr.mxu0 0.0
    %756 = vmatpush2.msra.mxu0 0.0
    %757 = vmatprep.subr.mxu0 0.0
    %758 = vmatpush2.msra.mxu0 0.0
    %759 = vmatprep.subr.mxu0 0.0
    %760 = vmatpush2.msra.mxu0 0.0
    %761 = vmatprep.subr.mxu0 0.0
    %762 = vmatpush2.msra.mxu0 0.0
    %763 = vmatprep.subr.mxu0 0.0
    %764 = vmatpush2.msra.mxu0 0.0
    %765 = vmatprep.subr.mxu0 0.0
    %766 = vmatpush2.msra.mxu0 0.0
    %767 = vmatprep.subr.mxu0 0.0
    %768 = vmatpush2.msra.mxu0 0.0
    %769 = vmatprep.subr.mxu0 0.0
    %770 = vmatpush2.msra.mxu0 0.0
    %771 = vmatprep.subr.mxu0 0.0
    %772 = vmatpush2.msra.mxu0 0.0
    %773 = vmatprep.subr.mxu0 0.0
    %774 = vmatpush2.msra.mxu0 0.0
    %775 = vmatprep.subr.mxu0 0.0
    %776 = vmatpush2.msra.mxu0 0.0
    %777 = vmatprep.subr.mxu0 0.0
    %778 = vmatpush2.msra.mxu0 0.0
    %779 = vmatprep.subr.mxu0 0.0
    %780 = vmatpush2.msra.mxu0 0.0
    %781 = vmatprep.mubr.f32.mxu0 0.0
    %782 = vmatmul.mubr.f32.gmra.mxu0 %v715
    %v783 = vpop.f32.mrf.mxu0
    %v784 = vadd.f32 0.0, %v783
    %v785 = vpop.f32.mrf.mxu0
    %786 = vdwg.mxu0
    %v788 = vsel %vm257, %v712, 0
    %790 = vmatprep.subr.mxu0 0.0
    %791 = vmatpush1.msra.mxu0 0.0
    %792 = vmatprep.subr.mxu0 0.0
    %793 = vmatpush1.msra.mxu0 0.0
    %794 = vmatprep.subr.mxu0 0.0
    %795 = vmatpush1.msra.mxu0 0.0
    %796 = vmatprep.subr.mxu0 0.0
    %797 = vmatpush1.msra.mxu0 0.0
    %798 = vmatprep.subr.mxu0 0.0
    %799 = vmatpush1.msra.mxu0 0.0
    %800 = vmatprep.subr.mxu0 0.0
    %801 = vmatpush1.msra.mxu0 0.0
    %802 = vmatprep.subr.mxu0 0.0
    %803 = vmatpush1.msra.mxu0 0.0
    %804 = vmatprep.subr.mxu0 0.0
    %805 = vmatpush1.msra.mxu0 0.0
    %806 = vmatprep.subr.mxu0 0.0
    %807 = vmatpush1.msra.mxu0 0.0
    %808 = vmatprep.subr.mxu0 0.0
    %809 = vmatpush1.msra.mxu0 0.0
    %810 = vmatprep.subr.mxu0 0.0
    %811 = vmatpush1.msra.mxu0 0.0
    %812 = vmatprep.subr.mxu0 0.0
    %813 = vmatpush1.msra.mxu0 0.0
    %814 = vmatprep.subr.mxu0 0.0
    %815 = vmatpush1.msra.mxu0 0.0
    %816 = vmatprep.subr.mxu0 0.0
    %817 = vmatpush1.msra.mxu0 0.0
    %818 = vmatprep.subr.mxu0 0.0
    %819 = vmatpush1.msra.mxu0 0.0
    %820 = vmatprep.subr.mxu0 0.0
    %821 = vmatpush1.msra.mxu0 %v708
    %822 = vmatprep.subr.mxu0 0.0
    %823 = vmatpush2.msra.mxu0 0.0
    %824 = vmatprep.subr.mxu0 0.0
    %825 = vmatpush2.msra.mxu0 0.0
    %826 = vmatprep.subr.mxu0 0.0
    %827 = vmatpush2.msra.mxu0 0.0
    %828 = vmatprep.subr.mxu0 0.0
    %829 = vmatpush2.msra.mxu0 0.0
    %830 = vmatprep.subr.mxu0 0.0
    %831 = vmatpush2.msra.mxu0 0.0
    %832 = vmatprep.subr.mxu0 0.0
    %833 = vmatpush2.msra.mxu0 0.0
    %834 = vmatprep.subr.mxu0 0.0
    %835 = vmatpush2.msra.mxu0 0.0
    %836 = vmatprep.subr.mxu0 0.0
    %837 = vmatpush2.msra.mxu0 0.0
    %838 = vmatprep.subr.mxu0 0.0
    %839 = vmatpush2.msra.mxu0 0.0
    %840 = vmatprep.subr.mxu0 0.0
    %841 = vmatpush2.msra.mxu0 0.0
    %842 = vmatprep.subr.mxu0 0.0
    %843 = vmatpush2.msra.mxu0 0.0
    %844 = vmatprep.subr.mxu0 0.0
    %845 = vmatpush2.msra.mxu0 0.0
    %846 = vmatprep.subr.mxu0 0.0
    %847 = vmatpush2.msra.mxu0 0.0
    %848 = vmatprep.subr.mxu0 0.0
    %849 = vmatpush2.msra.mxu0 0.0
    %850 = vmatprep.subr.mxu0 0.0
    %851 = vmatpush2.msra.mxu0 0.0
    %852 = vmatprep.subr.mxu0 0.0
    %853 = vmatpush2.msra.mxu0 0.0
    %854 = vmatprep.mubr.f32.mxu0 0.0
    %855 = vmatmul.mubr.f32.gmra.mxu0 %v788
    %v856 = vpop.f32.mrf.mxu0
    %v857 = vadd.f32 %v784, %v856
    %v858 = vpop.f32.mrf.mxu0
    %859 = vdwg.mxu0
    %v860 = vld [vmem:[#allocation2 + $0x10] sm:$0xff]
    %v862 = vsel %vm257, %v860, 0
    %864 = vmatprep.subr.mxu0 0.0
    %865 = vmatpush1.msra.mxu0 0.0
    %866 = vmatprep.subr.mxu0 0.0
    %867 = vmatpush1.msra.mxu0 0.0
    %868 = vmatprep.subr.mxu0 0.0
    %869 = vmatpush1.msra.mxu0 0.0
    %870 = vmatprep.subr.mxu0 0.0
    %871 = vmatpush1.msra.mxu0 0.0
    %872 = vmatprep.subr.mxu0 0.0
    %873 = vmatpush1.msra.mxu0 0.0
    %874 = vmatprep.subr.mxu0 0.0
    %875 = vmatpush1.msra.mxu0 0.0
    %876 = vmatprep.subr.mxu0 0.0
    %877 = vmatpush1.msra.mxu0 0.0
    %878 = vmatprep.subr.mxu0 0.0
    %879 = vmatpush1.msra.mxu0 0.0
    %880 = vmatprep.subr.mxu0 0.0
    %881 = vmatpush1.msra.mxu0 0.0
    %882 = vmatprep.subr.mxu0 0.0
    %883 = vmatpush1.msra.mxu0 0.0
    %884 = vmatprep.subr.mxu0 0.0
    %885 = vmatpush1.msra.mxu0 0.0
    %886 = vmatprep.subr.mxu0 0.0
    %887 = vmatpush1.msra.mxu0 0.0
    %888 = vmatprep.subr.mxu0 0.0
    %889 = vmatpush1.msra.mxu0 0.0
    %890 = vmatprep.subr.mxu0 0.0
    %891 = vmatpush1.msra.mxu0 0.0
    %892 = vmatprep.subr.mxu0 0.0
    %893 = vmatpush1.msra.mxu0 0.0
    %894 = vmatprep.subr.mxu0 0.0
    %895 = vmatpush1.msra.mxu0 %v710
    %896 = vmatprep.subr.mxu0 0.0
    %897 = vmatpush2.msra.mxu0 0.0
    %898 = vmatprep.subr.mxu0 0.0
    %899 = vmatpush2.msra.mxu0 0.0
    %900 = vmatprep.subr.mxu0 0.0
    %901 = vmatpush2.msra.mxu0 0.0
    %902 = vmatprep.subr.mxu0 0.0
    %903 = vmatpush2.msra.mxu0 0.0
    %904 = vmatprep.subr.mxu0 0.0
    %905 = vmatpush2.msra.mxu0 0.0
    %906 = vmatprep.subr.mxu0 0.0
    %907 = vmatpush2.msra.mxu0 0.0
    %908 = vmatprep.subr.mxu0 0.0
    %909 = vmatpush2.msra.mxu0 0.0
    %910 = vmatprep.subr.mxu0 0.0
    %911 = vmatpush2.msra.mxu0 0.0
    %912 = vmatprep.subr.mxu0 0.0
    %913 = vmatpush2.msra.mxu0 0.0
    %914 = vmatprep.subr.mxu0 0.0
    %915 = vmatpush2.msra.mxu0 0.0
    %916 = vmatprep.subr.mxu0 0.0
    %917 = vmatpush2.msra.mxu0 0.0
    %918 = vmatprep.subr.mxu0 0.0
    %919 = vmatpush2.msra.mxu0 0.0
    %920 = vmatprep.subr.mxu0 0.0
    %921 = vmatpush2.msra.mxu0 0.0
    %922 = vmatprep.subr.mxu0 0.0
    %923 = vmatpush2.msra.mxu0 0.0
    %924 = vmatprep.subr.mxu0 0.0
    %925 = vmatpush2.msra.mxu0 0.0
    %926 = vmatprep.subr.mxu0 0.0
    %927 = vmatpush2.msra.mxu0 0.0
    %928 = vmatprep.mubr.f32.mxu0 0.0
    %929 = vmatmul.mubr.f32.gmra.mxu0 %v862
    %v930 = vpop.f32.mrf.mxu0
    %v931 = vadd.f32 0.0, %v930
    %v932 = vpop.f32.mrf.mxu0
    %933 = vdwg.mxu0
    %v934 = vadd.f32 %v857, %v931
    %v935 = vld [vmem:[#allocation2 + $0x18] sm:$0xff]
    %v937 = vsel %vm257, %v935, 0
    %939 = vmatprep.subr.mxu0 0.0
    %940 = vmatpush1.msra.mxu0 0.0
    %941 = vmatprep.subr.mxu0 0.0
    %942 = vmatpush1.msra.mxu0 0.0
    %943 = vmatprep.subr.mxu0 0.0
    %944 = vmatpush1.msra.mxu0 0.0
    %945 = vmatprep.subr.mxu0 0.0
    %946 = vmatpush1.msra.mxu0 0.0
    %947 = vmatprep.subr.mxu0 0.0
    %948 = vmatpush1.msra.mxu0 0.0
    %949 = vmatprep.subr.mxu0 0.0
    %950 = vmatpush1.msra.mxu0 0.0
    %951 = vmatprep.subr.mxu0 0.0
    %952 = vmatpush1.msra.mxu0 0.0
    %953 = vmatprep.subr.mxu0 0.0
    %954 = vmatpush1.msra.mxu0 0.0
    %955 = vmatprep.subr.mxu0 0.0
    %956 = vmatpush1.msra.mxu0 0.0
    %957 = vmatprep.subr.mxu0 0.0
    %958 = vmatpush1.msra.mxu0 0.0
    %959 = vmatprep.subr.mxu0 0.0
    %960 = vmatpush1.msra.mxu0 0.0
    %961 = vmatprep.subr.mxu0 0.0
    %962 = vmatpush1.msra.mxu0 0.0
    %963 = vmatprep.subr.mxu0 0.0
    %964 = vmatpush1.msra.mxu0 0.0
    %965 = vmatprep.subr.mxu0 0.0
    %966 = vmatpush1.msra.mxu0 0.0
    %967 = vmatprep.subr.mxu0 0.0
    %968 = vmatpush1.msra.mxu0 0.0
    %969 = vmatprep.subr.mxu0 0.0
    %970 = vmatpush1.msra.mxu0 %v711
    %971 = vmatprep.subr.mxu0 0.0
    %972 = vmatpush2.msra.mxu0 0.0
    %973 = vmatprep.subr.mxu0 0.0
    %974 = vmatpush2.msra.mxu0 0.0
    %975 = vmatprep.subr.mxu0 0.0
    %976 = vmatpush2.msra.mxu0 0.0
    %977 = vmatprep.subr.mxu0 0.0
    %978 = vmatpush2.msra.mxu0 0.0
    %979 = vmatprep.subr.mxu0 0.0
    %980 = vmatpush2.msra.mxu0 0.0
    %981 = vmatprep.subr.mxu0 0.0
    %982 = vmatpush2.msra.mxu0 0.0
    %983 = vmatprep.subr.mxu0 0.0
    %984 = vmatpush2.msra.mxu0 0.0
    %985 = vmatprep.subr.mxu0 0.0
    %986 = vmatpush2.msra.mxu0 0.0
    %987 = vmatprep.subr.mxu0 0.0
    %988 = vmatpush2.msra.mxu0 0.0
    %989 = vmatprep.subr.mxu0 0.0
    %990 = vmatpush2.msra.mxu0 0.0
    %991 = vmatprep.subr.mxu0 0.0
    %992 = vmatpush2.msra.mxu0 0.0
    %993 = vmatprep.subr.mxu0 0.0
    %994 = vmatpush2.msra.mxu0 0.0
    %995 = vmatprep.subr.mxu0 0.0
    %996 = vmatpush2.msra.mxu0 0.0
    %997 = vmatprep.subr.mxu0 0.0
    %998 = vmatpush2.msra.mxu0 0.0
    %999 = vmatprep.subr.mxu0 0.0
    %1000 = vmatpush2.msra.mxu0 0.0
    %1001 = vmatprep.subr.mxu0 0.0
    %1002 = vmatpush2.msra.mxu0 0.0
    %1003 = vmatprep.mubr.f32.mxu0 0.0
    %1004 = vmatmul.mubr.f32.gmra.mxu0 %v937
    %v1005 = vpop.f32.mrf.mxu0
    %v1006 = vadd.f32 0.0, %v1005
    %v1007 = vpop.f32.mrf.mxu0
    %1008 = vdwg.mxu0
    %v1009 = vadd.f32 %v934, %v1006
    %v1010 = vld [vmem:[%s3 + $0x2] sm:$0x1]
    %v1011 = vlaneseq
    %v1012 = vshrl.u32 %v1011, 7
    %v1013 = vsub.s32 0, %v1012
    %v1014 = vrot.slane %v1010, %v1013
    %v1015 = vadd.f32 %v1009, %v1014
    %v1016 = vmax.f32 %v1015, 0.0
    %1017 = vst.msk [vmem:[#allocation2] sm:$0xff] %vm257, %v1016
    %s1018 = scalar_lea.vmem %s2, 64
    %v1019 = vld [vmem:[%s1018] sm:$0xff]
    %v1020 = vld [vmem:[%s1018 + $0x8] sm:$0xff]
    %v1021 = vld [vmem:[%s1018 + $0x10] sm:$0xff]
    %v1022 = vld [vmem:[%s1018 + $0x18] sm:$0xff]
    %v1023 = vld [vmem:[#allocation2] sm:$0x3]
    %v1024 = vld [vmem:[#allocation2 + $0x2] sm:$0x3]
    %v1026 = vsel %vm257, %v1024, 0
    %1028 = vmatprep.subr.mxu0 0.0
    %1029 = vmatpush1.msra.mxu0 0.0
    %1030 = vmatprep.subr.mxu0 0.0
    %1031 = vmatpush1.msra.mxu0 0.0
    %1032 = vmatprep.subr.mxu0 0.0
    %1033 = vmatpush1.msra.mxu0 0.0
    %1034 = vmatprep.subr.mxu0 0.0
    %1035 = vmatpush1.msra.mxu0 0.0
    %1036 = vmatprep.subr.mxu0 0.0
    %1037 = vmatpush1.msra.mxu0 0.0
    %1038 = vmatprep.subr.mxu0 0.0
    %1039 = vmatpush1.msra.mxu0 0.0
    %1040 = vmatprep.subr.mxu0 0.0
    %1041 = vmatpush1.msra.mxu0 0.0
    %1042 = vmatprep.subr.mxu0 0.0
    %1043 = vmatpush1.msra.mxu0 0.0
    %1044 = vmatprep.subr.mxu0 0.0
    %1045 = vmatpush1.msra.mxu0 0.0
    %1046 = vmatprep.subr.mxu0 0.0
    %1047 = vmatpush1.msra.mxu0 0.0
    %1048 = vmatprep.subr.mxu0 0.0
    %1049 = vmatpush1.msra.mxu0 0.0
    %1050 = vmatprep.subr.mxu0 0.0
    %1051 = vmatpush1.msra.mxu0 0.0
    %1052 = vmatprep.subr.mxu0 0.0
    %1053 = vmatpush1.msra.mxu0 0.0
    %1054 = vmatprep.subr.mxu0 0.0
    %1055 = vmatpush1.msra.mxu0 0.0
    %1056 = vmatprep.subr.mxu0 0.0
    %1057 = vmatpush1.msra.mxu0 0.0
    %1058 = vmatprep.subr.mxu0 0.0
    %1059 = vmatpush1.msra.mxu0 %v1020
    %1060 = vmatprep.subr.mxu0 0.0
    %1061 = vmatpush2.msra.mxu0 0.0
    %1062 = vmatprep.subr.mxu0 0.0
    %1063 = vmatpush2.msra.mxu0 0.0
    %1064 = vmatprep.subr.mxu0 0.0
    %1065 = vmatpush2.msra.mxu0 0.0
    %1066 = vmatprep.subr.mxu0 0.0
    %1067 = vmatpush2.msra.mxu0 0.0
    %1068 = vmatprep.subr.mxu0 0.0
    %1069 = vmatpush2.msra.mxu0 0.0
    %1070 = vmatprep.subr.mxu0 0.0
    %1071 = vmatpush2.msra.mxu0 0.0
    %1072 = vmatprep.subr.mxu0 0.0
    %1073 = vmatpush2.msra.mxu0 0.0
    %1074 = vmatprep.subr.mxu0 0.0
    %1075 = vmatpush2.msra.mxu0 0.0
    %1076 = vmatprep.subr.mxu0 0.0
    %1077 = vmatpush2.msra.mxu0 0.0
    %1078 = vmatprep.subr.mxu0 0.0
    %1079 = vmatpush2.msra.mxu0 0.0
    %1080 = vmatprep.subr.mxu0 0.0
    %1081 = vmatpush2.msra.mxu0 0.0
    %1082 = vmatprep.subr.mxu0 0.0
    %1083 = vmatpush2.msra.mxu0 0.0
    %1084 = vmatprep.subr.mxu0 0.0
    %1085 = vmatpush2.msra.mxu0 0.0
    %1086 = vmatprep.subr.mxu0 0.0
    %1087 = vmatpush2.msra.mxu0 0.0
    %1088 = vmatprep.subr.mxu0 0.0
    %1089 = vmatpush2.msra.mxu0 0.0
    %1090 = vmatprep.subr.mxu0 0.0
    %1091 = vmatpush2.msra.mxu0 0.0
    %1092 = vmatprep.mubr.f32.mxu0 0.0
    %1093 = vmatmul.mubr.f32.gmra.mxu0 %v1026
    %v1094 = vpop.f32.mrf.mxu0
    %v1095 = vadd.f32 0.0, %v1094
    %v1096 = vpop.f32.mrf.mxu0
    %1097 = vdwg.mxu0
    %v1099 = vsel %vm257, %v1023, 0
    %1101 = vmatprep.subr.mxu0 0.0
    %1102 = vmatpush1.msra.mxu0 0.0
    %1103 = vmatprep.subr.mxu0 0.0
    %1104 = vmatpush1.msra.mxu0 0.0
    %1105 = vmatprep.subr.mxu0 0.0
    %1106 = vmatpush1.msra.mxu0 0.0
    %1107 = vmatprep.subr.mxu0 0.0
    %1108 = vmatpush1.msra.mxu0 0.0
    %1109 = vmatprep.subr.mxu0 0.0
    %1110 = vmatpush1.msra.mxu0 0.0
    %1111 = vmatprep.subr.mxu0 0.0
    %1112 = vmatpush1.msra.mxu0 0.0
    %1113 = vmatprep.subr.mxu0 0.0
    %1114 = vmatpush1.msra.mxu0 0.0
    %1115 = vmatprep.subr.mxu0 0.0
    %1116 = vmatpush1.msra.mxu0 0.0
    %1117 = vmatprep.subr.mxu0 0.0
    %1118 = vmatpush1.msra.mxu0 0.0
    %1119 = vmatprep.subr.mxu0 0.0
    %1120 = vmatpush1.msra.mxu0 0.0
    %1121 = vmatprep.subr.mxu0 0.0
    %1122 = vmatpush1.msra.mxu0 0.0
    %1123 = vmatprep.subr.mxu0 0.0
    %1124 = vmatpush1.msra.mxu0 0.0
    %1125 = vmatprep.subr.mxu0 0.0
    %1126 = vmatpush1.msra.mxu0 0.0
    %1127 = vmatprep.subr.mxu0 0.0
    %1128 = vmatpush1.msra.mxu0 0.0
    %1129 = vmatprep.subr.mxu0 0.0
    %1130 = vmatpush1.msra.mxu0 0.0
    %1131 = vmatprep.subr.mxu0 0.0
    %1132 = vmatpush1.msra.mxu0 %v1019
    %1133 = vmatprep.subr.mxu0 0.0
    %1134 = vmatpush2.msra.mxu0 0.0
    %1135 = vmatprep.subr.mxu0 0.0
    %1136 = vmatpush2.msra.mxu0 0.0
    %1137 = vmatprep.subr.mxu0 0.0
    %1138 = vmatpush2.msra.mxu0 0.0
    %1139 = vmatprep.subr.mxu0 0.0
    %1140 = vmatpush2.msra.mxu0 0.0
    %1141 = vmatprep.subr.mxu0 0.0
    %1142 = vmatpush2.msra.mxu0 0.0
    %1143 = vmatprep.subr.mxu0 0.0
    %1144 = vmatpush2.msra.mxu0 0.0
    %1145 = vmatprep.subr.mxu0 0.0
    %1146 = vmatpush2.msra.mxu0 0.0
    %1147 = vmatprep.subr.mxu0 0.0
    %1148 = vmatpush2.msra.mxu0 0.0
    %1149 = vmatprep.subr.mxu0 0.0
    %1150 = vmatpush2.msra.mxu0 0.0
    %1151 = vmatprep.subr.mxu0 0.0
    %1152 = vmatpush2.msra.mxu0 0.0
    %1153 = vmatprep.subr.mxu0 0.0
    %1154 = vmatpush2.msra.mxu0 0.0
    %1155 = vmatprep.subr.mxu0 0.0
    %1156 = vmatpush2.msra.mxu0 0.0
    %1157 = vmatprep.subr.mxu0 0.0
    %1158 = vmatpush2.msra.mxu0 0.0
    %1159 = vmatprep.subr.mxu0 0.0
    %1160 = vmatpush2.msra.mxu0 0.0
    %1161 = vmatprep.subr.mxu0 0.0
    %1162 = vmatpush2.msra.mxu0 0.0
    %1163 = vmatprep.subr.mxu0 0.0
    %1164 = vmatpush2.msra.mxu0 0.0
    %1165 = vmatprep.mubr.f32.mxu0 0.0
    %1166 = vmatmul.mubr.f32.gmra.mxu0 %v1099
    %v1167 = vpop.f32.mrf.mxu0
    %v1168 = vadd.f32 %v1095, %v1167
    %v1169 = vpop.f32.mrf.mxu0
    %1170 = vdwg.mxu0
    %v1171 = vld [vmem:[#allocation2 + $0x4] sm:$0x3]
    %v1173 = vsel %vm257, %v1171, 0
    %1175 = vmatprep.subr.mxu0 0.0
    %1176 = vmatpush1.msra.mxu0 0.0
    %1177 = vmatprep.subr.mxu0 0.0
    %1178 = vmatpush1.msra.mxu0 0.0
    %1179 = vmatprep.subr.mxu0 0.0
    %1180 = vmatpush1.msra.mxu0 0.0
    %1181 = vmatprep.subr.mxu0 0.0
    %1182 = vmatpush1.msra.mxu0 0.0
    %1183 = vmatprep.subr.mxu0 0.0
    %1184 = vmatpush1.msra.mxu0 0.0
    %1185 = vmatprep.subr.mxu0 0.0
    %1186 = vmatpush1.msra.mxu0 0.0
    %1187 = vmatprep.subr.mxu0 0.0
    %1188 = vmatpush1.msra.mxu0 0.0
    %1189 = vmatprep.subr.mxu0 0.0
    %1190 = vmatpush1.msra.mxu0 0.0
    %1191 = vmatprep.subr.mxu0 0.0
    %1192 = vmatpush1.msra.mxu0 0.0
    %1193 = vmatprep.subr.mxu0 0.0
    %1194 = vmatpush1.msra.mxu0 0.0
    %1195 = vmatprep.subr.mxu0 0.0
    %1196 = vmatpush1.msra.mxu0 0.0
    %1197 = vmatprep.subr.mxu0 0.0
    %1198 = vmatpush1.msra.mxu0 0.0
    %1199 = vmatprep.subr.mxu0 0.0
    %1200 = vmatpush1.msra.mxu0 0.0
    %1201 = vmatprep.subr.mxu0 0.0
    %1202 = vmatpush1.msra.mxu0 0.0
    %1203 = vmatprep.subr.mxu0 0.0
    %1204 = vmatpush1.msra.mxu0 0.0
    %1205 = vmatprep.subr.mxu0 0.0
    %1206 = vmatpush1.msra.mxu0 %v1021
    %1207 = vmatprep.subr.mxu0 0.0
    %1208 = vmatpush2.msra.mxu0 0.0
    %1209 = vmatprep.subr.mxu0 0.0
    %1210 = vmatpush2.msra.mxu0 0.0
    %1211 = vmatprep.subr.mxu0 0.0
    %1212 = vmatpush2.msra.mxu0 0.0
    %1213 = vmatprep.subr.mxu0 0.0
    %1214 = vmatpush2.msra.mxu0 0.0
    %1215 = vmatprep.subr.mxu0 0.0
    %1216 = vmatpush2.msra.mxu0 0.0
    %1217 = vmatprep.subr.mxu0 0.0
    %1218 = vmatpush2.msra.mxu0 0.0
    %1219 = vmatprep.subr.mxu0 0.0
    %1220 = vmatpush2.msra.mxu0 0.0
    %1221 = vmatprep.subr.mxu0 0.0
    %1222 = vmatpush2.msra.mxu0 0.0
    %1223 = vmatprep.subr.mxu0 0.0
    %1224 = vmatpush2.msra.mxu0 0.0
    %1225 = vmatprep.subr.mxu0 0.0
    %1226 = vmatpush2.msra.mxu0 0.0
    %1227 = vmatprep.subr.mxu0 0.0
    %1228 = vmatpush2.msra.mxu0 0.0
    %1229 = vmatprep.subr.mxu0 0.0
    %1230 = vmatpush2.msra.mxu0 0.0
    %1231 = vmatprep.subr.mxu0 0.0
    %1232 = vmatpush2.msra.mxu0 0.0
    %1233 = vmatprep.subr.mxu0 0.0
    %1234 = vmatpush2.msra.mxu0 0.0
    %1235 = vmatprep.subr.mxu0 0.0
    %1236 = vmatpush2.msra.mxu0 0.0
    %1237 = vmatprep.subr.mxu0 0.0
    %1238 = vmatpush2.msra.mxu0 0.0
    %1239 = vmatprep.mubr.f32.mxu0 0.0
    %1240 = vmatmul.mubr.f32.gmra.mxu0 %v1173
    %v1241 = vpop.f32.mrf.mxu0
    %v1242 = vadd.f32 0.0, %v1241
    %v1243 = vpop.f32.mrf.mxu0
    %1244 = vdwg.mxu0
    %v1245 = vadd.f32 %v1168, %v1242
    %v1246 = vld [vmem:[#allocation2 + $0x6] sm:$0x3]
    %v1248 = vsel %vm257, %v1246, 0
    %1250 = vmatprep.subr.mxu0 0.0
    %1251 = vmatpush1.msra.mxu0 0.0
    %1252 = vmatprep.subr.mxu0 0.0
    %1253 = vmatpush1.msra.mxu0 0.0
    %1254 = vmatprep.subr.mxu0 0.0
    %1255 = vmatpush1.msra.mxu0 0.0
    %1256 = vmatprep.subr.mxu0 0.0
    %1257 = vmatpush1.msra.mxu0 0.0
    %1258 = vmatprep.subr.mxu0 0.0
    %1259 = vmatpush1.msra.mxu0 0.0
    %1260 = vmatprep.subr.mxu0 0.0
    %1261 = vmatpush1.msra.mxu0 0.0
    %1262 = vmatprep.subr.mxu0 0.0
    %1263 = vmatpush1.msra.mxu0 0.0
    %1264 = vmatprep.subr.mxu0 0.0
    %1265 = vmatpush1.msra.mxu0 0.0
    %1266 = vmatprep.subr.mxu0 0.0
    %1267 = vmatpush1.msra.mxu0 0.0
    %1268 = vmatprep.subr.mxu0 0.0
    %1269 = vmatpush1.msra.mxu0 0.0
    %1270 = vmatprep.subr.mxu0 0.0
    %1271 = vmatpush1.msra.mxu0 0.0
    %1272 = vmatprep.subr.mxu0 0.0
    %1273 = vmatpush1.msra.mxu0 0.0
    %1274 = vmatprep.subr.mxu0 0.0
    %1275 = vmatpush1.msra.mxu0 0.0
    %1276 = vmatprep.subr.mxu0 0.0
    %1277 = vmatpush1.msra.mxu0 0.0
    %1278 = vmatprep.subr.mxu0 0.0
    %1279 = vmatpush1.msra.mxu0 0.0
    %1280 = vmatprep.subr.mxu0 0.0
    %1281 = vmatpush1.msra.mxu0 %v1022
    %1282 = vmatprep.subr.mxu0 0.0
    %1283 = vmatpush2.msra.mxu0 0.0
    %1284 = vmatprep.subr.mxu0 0.0
    %1285 = vmatpush2.msra.mxu0 0.0
    %1286 = vmatprep.subr.mxu0 0.0
    %1287 = vmatpush2.msra.mxu0 0.0
    %1288 = vmatprep.subr.mxu0 0.0
    %1289 = vmatpush2.msra.mxu0 0.0
    %1290 = vmatprep.subr.mxu0 0.0
    %1291 = vmatpush2.msra.mxu0 0.0
    %1292 = vmatprep.subr.mxu0 0.0
    %1293 = vmatpush2.msra.mxu0 0.0
    %1294 = vmatprep.subr.mxu0 0.0
    %1295 = vmatpush2.msra.mxu0 0.0
    %1296 = vmatprep.subr.mxu0 0.0
    %1297 = vmatpush2.msra.mxu0 0.0
    %1298 = vmatprep.subr.mxu0 0.0
    %1299 = vmatpush2.msra.mxu0 0.0
    %1300 = vmatprep.subr.mxu0 0.0
    %1301 = vmatpush2.msra.mxu0 0.0
    %1302 = vmatprep.subr.mxu0 0.0
    %1303 = vmatpush2.msra.mxu0 0.0
    %1304 = vmatprep.subr.mxu0 0.0
    %1305 = vmatpush2.msra.mxu0 0.0
    %1306 = vmatprep.subr.mxu0 0.0
    %1307 = vmatpush2.msra.mxu0 0.0
    %1308 = vmatprep.subr.mxu0 0.0
    %1309 = vmatpush2.msra.mxu0 0.0
    %1310 = vmatprep.subr.mxu0 0.0
    %1311 = vmatpush2.msra.mxu0 0.0
    %1312 = vmatprep.subr.mxu0 0.0
    %1313 = vmatpush2.msra.mxu0 0.0
    %1314 = vmatprep.mubr.f32.mxu0 0.0
    %1315 = vmatmul.mubr.f32.gmra.mxu0 %v1248
    %v1316 = vpop.f32.mrf.mxu0
    %v1317 = vadd.f32 0.0, %v1316
    %v1318 = vpop.f32.mrf.mxu0
    %1319 = vdwg.mxu0
    %v1320 = vadd.f32 %v1245, %v1317
    %v1321 = vld [vmem:[%s3 + $0x3] sm:$0x1]
    %v1322 = vlaneseq
    %v1323 = vshrl.u32 %v1322, 7
    %v1324 = vsub.s32 0, %v1323
    %v1325 = vrot.slane %v1321, %v1324
    %v1326 = vadd.f32 %v1320, %v1325
    %v1327 = vmax.f32 %v1326, 0.0
    %v1328 = vld [vmem:[%s4] sm:$0x3]
    %vm1329 = vcmask 15360
    %v1331 = vsel %vm1329, %v1328, 0
    %vm1333 = vcmask 1041408
    %v1335 = vsel %vm1333, %v1327, 0
    %1337 = vmatprep.subr.mxu0 0.0
    %1338 = vmatpush1.msra.mxu0 0.0
    %1339 = vmatprep.subr.mxu0 0.0
    %1340 = vmatpush1.msra.mxu0 0.0
    %1341 = vmatprep.subr.mxu0 0.0
    %1342 = vmatpush1.msra.mxu0 0.0
    %1343 = vmatprep.subr.mxu0 0.0
    %1344 = vmatpush1.msra.mxu0 0.0
    %1345 = vmatprep.subr.mxu0 0.0
    %1346 = vmatpush1.msra.mxu0 0.0
    %1347 = vmatprep.subr.mxu0 0.0
    %1348 = vmatpush1.msra.mxu0 0.0
    %1349 = vmatprep.subr.mxu0 0.0
    %1350 = vmatpush1.msra.mxu0 0.0
    %1351 = vmatprep.subr.mxu0 0.0
    %1352 = vmatpush1.msra.mxu0 0.0
    %1353 = vmatprep.subr.mxu0 0.0
    %1354 = vmatpush1.msra.mxu0 0.0
    %1355 = vmatprep.subr.mxu0 0.0
    %1356 = vmatpush1.msra.mxu0 0.0
    %1357 = vmatprep.subr.mxu0 0.0
    %1358 = vmatpush1.msra.mxu0 0.0
    %1359 = vmatprep.subr.mxu0 0.0
    %1360 = vmatpush1.msra.mxu0 0.0
    %1361 = vmatprep.subr.mxu0 0.0
    %1362 = vmatpush1.msra.mxu0 0.0
    %1363 = vmatprep.subr.mxu0 0.0
    %1364 = vmatpush1.msra.mxu0 0.0
    %1365 = vmatprep.subr.mxu0 0.0
    %1366 = vmatpush1.msra.mxu0 0.0
    %1367 = vmatprep.subr.mxu0 0.0
    %1368 = vmatpush1.msra.mxu0 %v1335
    %1369 = vmatprep.subr.mxu0 0.0
    %1370 = vmatpush2.msra.mxu0 0.0
    %1371 = vmatprep.subr.mxu0 0.0
    %1372 = vmatpush2.msra.mxu0 0.0
    %1373 = vmatprep.subr.mxu0 0.0
    %1374 = vmatpush2.msra.mxu0 0.0
    %1375 = vmatprep.subr.mxu0 0.0
    %1376 = vmatpush2.msra.mxu0 0.0
    %1377 = vmatprep.subr.mxu0 0.0
    %1378 = vmatpush2.msra.mxu0 0.0
    %1379 = vmatprep.subr.mxu0 0.0
    %1380 = vmatpush2.msra.mxu0 0.0
    %1381 = vmatprep.subr.mxu0 0.0
    %1382 = vmatpush2.msra.mxu0 0.0
    %1383 = vmatprep.subr.mxu0 0.0
    %1384 = vmatpush2.msra.mxu0 0.0
    %1385 = vmatprep.subr.mxu0 0.0
    %1386 = vmatpush2.msra.mxu0 0.0
    %1387 = vmatprep.subr.mxu0 0.0
    %1388 = vmatpush2.msra.mxu0 0.0
    %1389 = vmatprep.subr.mxu0 0.0
    %1390 = vmatpush2.msra.mxu0 0.0
    %1391 = vmatprep.subr.mxu0 0.0
    %1392 = vmatpush2.msra.mxu0 0.0
    %1393 = vmatprep.subr.mxu0 0.0
    %1394 = vmatpush2.msra.mxu0 0.0
    %1395 = vmatprep.subr.mxu0 0.0
    %1396 = vmatpush2.msra.mxu0 0.0
    %1397 = vmatprep.subr.mxu0 0.0
    %1398 = vmatpush2.msra.mxu0 0.0
    %1399 = vmatprep.subr.mxu0 0.0
    %1400 = vmatpush2.msra.mxu0 0.0
    %1401 = vmatprep.mubr.f32.mxu0 0.0
    %1402 = vmatmul.mubr.f32.gmra.mxu0 %v1331
    %v1403 = vpop.f32.mrf.mxu0
    %v1404 = vadd.f32 0.0, %v1403
    %v1405 = vpop.f32.mrf.mxu0
    %1406 = vdwg.mxu0
    %vm1407 = vcmask 58368
    %1408 = vst.msk [vmem:[#allocation3] sm:$0x3] %vm1407, %v1404
    // Predicated region
    $region22: #{encoder_forward.1} parent=1 // pred_check
      _
    $region23: #{encoder_forward.1} parent=1 // pred_check_branch
      %1410 = sbr.rel (0) target = $region25
    $region24: #{encoder_forward.1} parent=1 // pred_region
      %s1412 = ssub.s32 32, 32
      %1413 = vsyncadd [#allocation4], %s1412
      %s1415 = sshll.u32 [#allocation3], 4
      %s1416 = int_to_ptr.vmem [resolvable:$true] %s1415
      %1418 = dma.vmem_to_hbm [thread:$0]  %s1416, 32, %s5, [#allocation4]
    $region25: #{encoder_forward.1} parent=1 // pred_fallthru
      _
    // Predicated region
    $region26: #{encoder_forward.1} parent=1 // pred_check
      _
    $region27: #{encoder_forward.1} parent=1 // pred_check_branch
      %1420 = sbr.rel (0) target = $region29
    $region28: #{encoder_forward.1} parent=1 // pred_region
      %1421 = dma.done [#allocation4], 32
    $region29: #{encoder_forward.1} parent=1 // pred_fallthru
      _
    %1422 = vsyncpa [#allocation4], 1

</llo_original>
